<compile_context>
chip_gen: v7x
topology: tpu7x:2x2x1
jax: 0.10.0
libtpu: 0.0.40
codegen_flags: <defaults>
</compile_context>

<pallas_src>
from functools import partial

import numpy as np

import jax
import jax.numpy as jnp
from jax.experimental import pallas as pl
from jax.experimental.pallas import tpu as pltpu

EPS = 1e-5                   # nn.BatchNorm2d default eps
KW = 4                       # all convs use kernel (1, 4)
C1, C2, C3 = 16, 32, 16      # channel widths fixed by the module


# ---------------------------------------------------------------------------
# Fused Pallas kernel (built as a closure over the static geometry)
# ---------------------------------------------------------------------------
def _make_kernel(B, W, C0, label_num):
    W1o, W2o, W3o = W // 2, W // 4, W // 8          # widths after each GLU layer
    wp1, wp2, wp3 = W + 2, W1o + 2, W2o + 2         # per-batch padded widths
    N1, N2, N3 = B * (W1o + 1), B * (W2o + 1), B * (W3o + 1)
    # row offsets of each layer's (KW*Cin, 2*Cout) block inside the weight slab
    R1 = 0
    R2 = R1 + KW * C0
    R3 = R2 + KW * C1
    R4 = R3 + KW * C2

    def kernel(x_ref, w_ref, v_ref, m_ref, out_ref, pad1, pad2, pad3, out3):
        v = v_ref[...]                               # (10, >=64) bias/gamma/beta rows
        mall = m_ref[...]                            # (N1+N2+N3, 1) junk-row masks
        m1 = mall[0:N1, :]
        m2 = mall[N1:N1 + N2, :]
        m3 = mall[N1 + N2:N1 + N2 + N3, :]

        # ---- stage x into the zero-padded layer-1 slab (pad done in-kernel) -------
        # Only the border rows are zeroed (review item 8); interiors are overwritten.
        zc0 = jnp.zeros((1, C0), jnp.float32)
        for b in range(B):
            pad1[pl.ds(b * wp1, 1), :] = zc0                         # left pad row
            pad1[pl.ds(b * wp1 + 1, W), :] = x_ref[pl.ds(b * W, W), :]
            pad1[pl.ds(b * wp1 + 1 + W, 1), :] = zc0                 # right pad row
        pad1[pl.ds(B * wp1, 2), :] = jnp.zeros((2, C0), jnp.float32)  # trailing rows

        def conv_glu(src_ref, wrow, cin, c2, vrow, n, wout, mask):
            """Conv(kW=4,s=2,p=1) -> BatchNorm(batch stats) -> GLU over ALL batches.

            src_ref: per-batch zero-padded (2*wout+2, cin) blocks stacked on sublanes
                     (+2 trailing zero rows).  Returns (n, c2//2) with one junk row per
                     batch at index b*(wout+1)+wout (masked out of BN, never stored).
            """
            w_all = w_ref[pl.ds(wrow, KW * cin), :]                  # (4*cin, wmax)
            # 4 accumulating tap matmuls on cross-batch stride-2 views (item 1).
            # Written as an accumulation chain so v7x can keep it in the MRB (item 10).
            acc = jnp.dot(src_ref[pl.ds(0, n, stride=2), :], w_all[0:cin, 0:c2],
                          preferred_element_type=jnp.float32)
            for t in range(1, KW):
                acc = acc + jnp.dot(src_ref[pl.ds(t, n, stride=2), :],
                                    w_all[t * cin:(t + 1) * cin, 0:c2],
                                    preferred_element_type=jnp.float32)
            h = acc + v[vrow:vrow + 1, 0:c2]                         # conv bias

            # BatchNorm2d, training-mode batch statistics, single pass over one tile
            # (item 5); junk rows zeroed by the mask so they do not pollute the stats.
            hm = h * mask
            inv_n = 1.0 / float(B * wout)
            mean = jnp.sum(hm, axis=0, keepdims=True) * inv_n
            var = jnp.sum(hm * hm, axis=0, keepdims=True) * inv_n - mean * mean
            scale = v[vrow + 1:vrow + 2, 0:c2] * jax.lax.rsqrt(var + EPS)
            shift = v[vrow + 2:vrow + 3, 0:c2] - mean * scale
            hn = h * scale + shift                                   # [cnn | gate]

            cout = c2 // 2
            gate = pl.reciprocal(1.0 + jnp.exp(-hn[:, cout:c2]), approx=True)  # EUP
            return hn[:, 0:cout] * gate                              # (n, cout)

        def scatter(dst_ref, y, wout, wpn, cout):
            """Drop junk rows, store per-batch activations + zero border rows only."""
            zr = jnp.zeros((1, cout), jnp.float32)
            for b in range(B):
                dst_ref[pl.ds(b * wpn, 1), :] = zr
                dst_ref[pl.ds(b * wpn + 1, wout), :] = \
                    y[b * (wout + 1):b * (wout + 1) + wout, :]
                dst_ref[pl.ds(b * wpn + 1 + wout, 1), :] = zr
            dst_ref[pl.ds(B * wpn, 2), :] = jnp.zeros((2, cout), jnp.float32)

        # ---- three Conv2d_GLU layers, everything resident in VMEM ------------------
        y1 = conv_glu(pad1, R1, C0, 2 * C1, 0, N1, W1o, m1)
        scatter(pad2, y1, W1o, wp2, C1)
        y2 = conv_glu(pad2, R2, C1, 2 * C2, 3, N2, W2o, m2)
        scatter(pad3, y2, W2o, wp3, C2)
        y3 = conv_glu(pad3, R3, C2, 2 * C3, 6, N3, W3o, m3)

        # layer-3 valid rows -> contiguous (B*W3o, C3) im2col rows for conv_out
        for b in range(B):
            out3[pl.ds(b * W3o, W3o), :] = y3[b * (W3o + 1):b * (W3o + 1) + W3o, :]

        # ---- conv_out (kW=4, s=4, p=0): 4 batched tap matmuls on stride-4 views ----
        wo = w_ref[pl.ds(R4, KW * C3), :]
        logits = jnp.dot(out3[pl.ds(0, B, stride=W3o), :], wo[0:C3, 0:label_num],
                         preferred_element_type=jnp.float32)
        for t in range(1, KW):
            logits = logits + jnp.dot(out3[pl.ds(t, B, stride=W3o), :],
                                      wo[t * C3:(t + 1) * C3, 0:label_num],
                                      preferred_element_type=jnp.float32)
        logits = logits + v[9:10, 0:label_num]

        # ---- LogSoftmax over the whole (B, label_num) tile + single store (item 4) --
        mmax = jnp.max(logits, axis=1, keepdims=True)
        z = logits - mmax
        lse = jnp.log(jnp.sum(jnp.exp(z), axis=1, keepdims=True))
        out_ref[...] = z - lse

    return kernel


# ---------------------------------------------------------------------------
# JAX glue: parameter packing (done once), wrapper
# ---------------------------------------------------------------------------
def _full_spec(shape):
    n = len(shape)
    return pl.BlockSpec(shape, lambda i, _n=n: (0,) * _n)


def _conv_rows(w):
    """PyTorch Conv2d weight (Cout, Cin, 1, KW) -> (KW*Cin, Cout), tap-major rows."""
    cout, cin = w.shape[0], w.shape[1]
    return jnp.transpose(w[:, :, 0, :], (2, 1, 0)).reshape(KW * cin, cout)


def pack_params(params):
    """Pack the 14 PyTorch-style tensors into 2 fp32 slabs (2 DMAs instead of 15).

    Done once at init time, outside jit (review item 6)."""
    label_num = int(params["conv_out"]["w"].shape[0])
    wmax = max(2 * C2, label_num)                    # widest fused channel dim

    def fuse(p):                                     # cnn ++ gate along output channels
        w = jnp.concatenate([_conv_rows(p["w_cnn"]), _conv_rows(p["w_gate"])], axis=1)
        b = jnp.concatenate([p["b_cnn"], p["b_gate"]])
        g = jnp.concatenate([p["gamma_cnn"], p["gamma_gate"]])
        be = jnp.concatenate([p["beta_cnn"], p["beta_gate"]])
        return w, b, g, be

    padw = lambda a: jnp.pad(a, ((0, 0), (0, wmax - a.shape[1])))
    padv = lambda a: jnp.pad(a, ((0, wmax - a.shape[0]),))[None, :]

    l1, l2, l3 = fuse(params["conv1"]), fuse(params["conv2"]), fuse(params["conv3"])
    wo = _conv_rows(params["conv_out"]["w"])
    bo = params["conv_out"]["b"]

    w_slab = jnp.concatenate([padw(l1[0]), padw(l2[0]), padw(l3[0]), padw(wo)], axis=0)
    v_slab = jnp.concatenate(
        [padv(l1[1]), padv(l1[2]), padv(l1[3]),
         padv(l2[1]), padv(l2[2]), padv(l2[3]),
         padv(l3[1]), padv(l3[2]), padv(l3[3]),
         padv(bo)], axis=0)
    return {"w": w_slab.astype(jnp.float32), "v": v_slab.astype(jnp.float32),
            "label_num": label_num}


def init_params(key, latent_dim, label_num, scale=0.1):
    """Random parameters mirroring the PyTorch module's tensors."""
    def conv(k, cin, cout, kw):
        kw_, kb_ = jax.random.split(k)
        w = jax.random.normal(kw_, (cout, cin, 1, kw), jnp.float32) * scale
        b = jax.random.normal(kb_, (cout,), jnp.float32) * scale
        return w, b

    def glu(k, cin, cout):
        k1, k2 = jax.random.split(k)
        w_cnn, b_cnn = conv(k1, cin, cout, KW)
        w_gate, b_gate = conv(k2, cin, cout, KW)
        return dict(w_cnn=w_cnn, b_cnn=b_cnn, w_gate=w_gate, b_gate=b_gate,
                    gamma_cnn=jnp.ones((cout,), jnp.float32),
                    beta_cnn=jnp.zeros((cout,), jnp.float32),
                    gamma_gate=jnp.ones((cout,), jnp.float32),
                    beta_gate=jnp.zeros((cout,), jnp.float32))

    ks = jax.random.split(key, 4)
    w_out, b_out = conv(ks[3], C3, label_num, KW)
    return dict(conv1=glu(ks[0], latent_dim, C1),
                conv2=glu(ks[1], C1, C2),
                conv3=glu(ks[2], C2, C3),
                conv_out=dict(w=w_out, b=b_out))


@partial(jax.jit, static_argnames=("label_num",))
def latent_classifier_forward(x_nchw, w_slab, v_slab, *, label_num):
    """Forward pass of LatentClassifier.  x_nchw: (B, latent_dim, 1, 32)."""
    B, C0, H, W = x_nchw.shape
    assert H == 1 and W == 32, "LatentClassifier expects (*, latent_dim, 1, 32) inputs"
    assert w_slab.shape[0] == KW * (C0 + C1 + C2 + C3), "weight slab / input mismatch"

    # Channels-last (B*W, C0): a single fused XLA copy.  Zero-padding and per-batch
    # slab layout happen inside the kernel.
    x = jnp.transpose(x_nchw[:, :, 0, :], (0, 2, 1)).reshape(B * W, C0)

    # Junk-row masks for the cross-batch stride-2 im2col views (trace-time constants).
    def junk_mask(wout):
        m = np.ones((B, wout + 1), np.float32)
        m[:, wout] = 0.0
        return m.reshape(B * (wout + 1), 1)
    mask = jnp.asarray(np.concatenate(
        [junk_mask(W // 2), junk_mask(W // 4), junk_mask(W // 8)], axis=0))

    kernel = _make_kernel(B, W, C0, label_num)
    args = (x, w_slab, v_slab, mask)
    return pl.pallas_call(
        kernel,
        grid=(1,),
        in_specs=[_full_spec(a.shape) for a in args],
        out_specs=_full_spec((B, label_num)),
        out_shape=jax.ShapeDtypeStruct((B, label_num), jnp.float32),
        scratch_shapes=[
            pltpu.VMEM((B * (W + 2) + 2, C0), jnp.float32),        # padded layer-1 input
            pltpu.VMEM((B * (W // 2 + 2) + 2, C1), jnp.float32),   # padded layer-2 input
            pltpu.VMEM((B * (W // 4 + 2) + 2, C2), jnp.float32),   # padded layer-3 input
            pltpu.VMEM((B * (W // 8), C3), jnp.float32),           # conv_out im2col rows
        ],
        compiler_params=pltpu.CompilerParams(dimension_semantics=("arbitrary",)),
    )(*args)


# ---------------------------------------------------------------------------
# Pure-JAX reference (train-mode BN, exact sigmoid) for the self-check
# ---------------------------------------------------------------------------
def _ref_conv(x, w, b, stride, pad):                 # x: (B, Cin, W); w: (Cout, Cin, 1, KW)
    y = jax.lax.conv_general_dilated(
        x[:, :, None, :], w, window_strides=(1, stride),
        padding=((0, 0), (pad, pad)), dimension_numbers=("NCHW", "OIHW", "NCHW"))
    return y[:, :, 0, :] + b[None, :, None]


def _ref_forward(x_nchw, params):
    def norm(h, gamma, beta):
        mean = jnp.mean(h, axis=(0, 2), keepdims=True)
        var = jnp.mean((h - mean) ** 2, axis=(0, 2), keepdims=True)
        return gamma[None, :, None] * (h - mean) * jax.lax.rsqrt(var + EPS) \
            + beta[None, :, None]

    h = x_nchw[:, :, 0, :]
    for name in ("conv1", "conv2", "conv3"):
        p = params[name]
        h1 = norm(_ref_conv(h, p["w_cnn"], p["b_cnn"], 2, 1), p["gamma_cnn"], p["beta_cnn"])
        h2 = norm(_ref_conv(h, p["w_gate"], p["b_gate"], 2, 1), p["gamma_gate"], p["beta_gate"])
        h = h1 * jax.nn.sigmoid(h2)
    o = _ref_conv(h, params["conv_out"]["w"], params["conv_out"]["b"], 4, 0)[:, :, 0]
    return jax.nn.log_softmax(o, axis=1)


if __name__ == "__main__":
    latent_dim, label_num = 8, 4        # docstring: latent (8, 1, 32) -> ... -> (spk, 1, 1)
    B, W = 2, 32
    key = jax.random.PRNGKey(0)
    k_x, k_p = jax.random.split(key)

    x = jax.random.normal(k_x, (B, latent_dim, 1, W), jnp.float32)   # NCHW
    params = init_params(k_p, latent_dim, label_num)
    packed = pack_params(params)                                     # once, outside jit

    out = latent_classifier_forward(x, packed["w"], packed["v"],
                                    label_num=packed["label_num"])
    out = jax.block_until_ready(out)

    assert out.shape == (B, label_num), out.shape
    assert bool(jnp.all(jnp.isfinite(out)))
    # log-softmax rows should sum to ~1 in prob space
    assert bool(jnp.allclose(jnp.sum(jnp.exp(out), axis=1), 1.0, atol=1e-5))
    # parity with a pure-JAX reference (loose tolerance: approximate-reciprocal sigmoid)
    ref = _ref_forward(x, params)
    err = float(jnp.max(jnp.abs(out - ref)))
    assert err < 3e-2, f"max |pallas - reference| = {err}"
    print("KERNEL_OK")
</pallas_src>

<mosaic_0001>
module attributes {stable_mosaic.version = 11 : i64} {
  func.func @kernel(%arg0: i32, %arg1: memref<64x8xf32, #tpu.memory_space<vmem>>, %arg2: memref<288x64xf32, #tpu.memory_space<vmem>>, %arg3: memref<10x64xf32, #tpu.memory_space<vmem>>, %arg4: memref<62x1xf32, #tpu.memory_space<vmem>>, %arg5: memref<2x4xf32, #tpu.memory_space<vmem>>, %arg6: memref<70x8xf32, #tpu.memory_space<vmem>>, %arg7: memref<38x16xf32, #tpu.memory_space<vmem>>, %arg8: memref<22x32xf32, #tpu.memory_space<vmem>>, %arg9: memref<8x16xf32, #tpu.memory_space<vmem>>) attributes {dimension_semantics = [#tpu.dimension_semantics<arbitrary>], iteration_bounds = array<i64: 1>, scalar_prefetch = 0 : i64, scratch_operands = 4 : i64, tpu.core_type = #tpu.core_type<tc>, window_params = [{pipeline_mode = #tpu.pipeline_mode<synchronous>, transform_indices = @transform_0, window_bounds = array<i64: 64, 8>}, {pipeline_mode = #tpu.pipeline_mode<synchronous>, transform_indices = @transform_1, window_bounds = array<i64: 288, 64>}, {pipeline_mode = #tpu.pipeline_mode<synchronous>, transform_indices = @transform_2, window_bounds = array<i64: 10, 64>}, {pipeline_mode = #tpu.pipeline_mode<synchronous>, transform_indices = @transform_3, window_bounds = array<i64: 62, 1>}, {pipeline_mode = #tpu.pipeline_mode<synchronous>, transform_indices = @transform_4, window_bounds = array<i64: 2, 4>}]} {
    %c0 = arith.constant 0 : index
    %c0_0 = arith.constant 0 : index
    %0 = vector.load %arg3[%c0, %c0_0] : memref<10x64xf32, #tpu.memory_space<vmem>>, vector<10x64xf32>
    %c0_1 = arith.constant 0 : index
    %c0_2 = arith.constant 0 : index
    %1 = vector.load %arg4[%c0_1, %c0_2] : memref<62x1xf32, #tpu.memory_space<vmem>>, vector<62x1xf32>
    %2 = vector.extract_strided_slice %1 {offsets = [0, 0], sizes = [34, 1], strides = [1, 1]} : vector<62x1xf32> to vector<34x1xf32>
    %3 = vector.extract_strided_slice %1 {offsets = [34, 0], sizes = [18, 1], strides = [1, 1]} : vector<62x1xf32> to vector<18x1xf32>
    %4 = vector.extract_strided_slice %1 {offsets = [52, 0], sizes = [10, 1], strides = [1, 1]} : vector<62x1xf32> to vector<10x1xf32>
    %cst = arith.constant 0.000000e+00 : f32
    %5 = vector.broadcast %cst : f32 to vector<1x8xf32>
    %c0_3 = arith.constant 0 : index
    %c0_4 = arith.constant 0 : index
    %6 = vector.load %arg6[%c0_3, %c0_4] : memref<70x8xf32, #tpu.memory_space<vmem>>, vector<1x8xf32>
    tpu.vector_store %arg6[%c0_3, %c0_4], %5 {strides = array<i32>} : memref<70x8xf32, #tpu.memory_space<vmem>>, vector<1x8xf32>,
    %c0_5 = arith.constant 0 : index
    %c0_6 = arith.constant 0 : index
    %7 = vector.load %arg1[%c0_5, %c0_6] : memref<64x8xf32, #tpu.memory_space<vmem>>, vector<32x8xf32>
    %c1 = arith.constant 1 : index
    %c0_7 = arith.constant 0 : index
    %8 = vector.load %arg6[%c1, %c0_7] : memref<70x8xf32, #tpu.memory_space<vmem>>, vector<32x8xf32>
    tpu.vector_store %arg6[%c1, %c0_7], %7 {strides = array<i32>} : memref<70x8xf32, #tpu.memory_space<vmem>>, vector<32x8xf32>,
    %c33 = arith.constant 33 : index
    %c0_8 = arith.constant 0 : index
    %9 = vector.load %arg6[%c33, %c0_8] : memref<70x8xf32, #tpu.memory_space<vmem>>, vector<1x8xf32>
    tpu.vector_store %arg6[%c33, %c0_8], %5 {strides = array<i32>} : memref<70x8xf32, #tpu.memory_space<vmem>>, vector<1x8xf32>,
    %c34 = arith.constant 34 : index
    %c0_9 = arith.constant 0 : index
    %10 = vector.load %arg6[%c34, %c0_9] : memref<70x8xf32, #tpu.memory_space<vmem>>, vector<1x8xf32>
    tpu.vector_store %arg6[%c34, %c0_9], %5 {strides = array<i32>} : memref<70x8xf32, #tpu.memory_space<vmem>>, vector<1x8xf32>,
    %c32 = arith.constant 32 : index
    %c0_10 = arith.constant 0 : index
    %11 = vector.load %arg1[%c32, %c0_10] : memref<64x8xf32, #tpu.memory_space<vmem>>, vector<32x8xf32>
    %c35 = arith.constant 35 : index
    %c0_11 = arith.constant 0 : index
    %12 = vector.load %arg6[%c35, %c0_11] : memref<70x8xf32, #tpu.memory_space<vmem>>, vector<32x8xf32>
    tpu.vector_store %arg6[%c35, %c0_11], %11 {strides = array<i32>} : memref<70x8xf32, #tpu.memory_space<vmem>>, vector<32x8xf32>,
    %c67 = arith.constant 67 : index
    %c0_12 = arith.constant 0 : index
    %13 = vector.load %arg6[%c67, %c0_12] : memref<70x8xf32, #tpu.memory_space<vmem>>, vector<1x8xf32>
    tpu.vector_store %arg6[%c67, %c0_12], %5 {strides = array<i32>} : memref<70x8xf32, #tpu.memory_space<vmem>>, vector<1x8xf32>,
    %cst_13 = arith.constant 0.000000e+00 : f32
    %14 = vector.broadcast %cst_13 : f32 to vector<2x8xf32>
    %c68 = arith.constant 68 : index
    %c0_14 = arith.constant 0 : index
    %15 = vector.load %arg6[%c68, %c0_14] : memref<70x8xf32, #tpu.memory_space<vmem>>, vector<2x8xf32>
    tpu.vector_store %arg6[%c68, %c0_14], %14 {strides = array<i32>} : memref<70x8xf32, #tpu.memory_space<vmem>>, vector<2x8xf32>,
    %c0_15 = arith.constant 0 : index
    %c0_16 = arith.constant 0 : index
    %16 = vector.load %arg2[%c0_15, %c0_16] : memref<288x64xf32, #tpu.memory_space<vmem>>, vector<32x64xf32>
    %c0_17 = arith.constant 0 : index
    %c0_18 = arith.constant 0 : index
    %17 = tpu.strided_load %arg6[%c0_17, %c0_18] {strides = array<i32: 2, 1>} : memref<70x8xf32, #tpu.memory_space<vmem>>, vector<34x8xf32>
    %18 = vector.extract_strided_slice %16 {offsets = [0, 0], sizes = [8, 32], strides = [1, 1]} : vector<32x64xf32> to vector<8x32xf32>
    %cst_19 = arith.constant dense<0.000000e+00> : vector<34x32xf32>
    %19 = tpu.matmul %17, %18, %cst_19 {dimension_numbers = #tpu.dot_dimension_numbers<[1], [0], [0], [1], [0, 0, 1, 1], [], []>} : vector<34x8xf32>, vector<8x32xf32>, vector<34x32xf32> -> vector<34x32xf32>
    %c1_20 = arith.constant 1 : index
    %c0_21 = arith.constant 0 : index
    %20 = tpu.strided_load %arg6[%c1_20, %c0_21] {strides = array<i32: 2, 1>} : memref<70x8xf32, #tpu.memory_space<vmem>>, vector<34x8xf32>
    %21 = vector.extract_strided_slice %16 {offsets = [8, 0], sizes = [8, 32], strides = [1, 1]} : vector<32x64xf32> to vector<8x32xf32>
    %cst_22 = arith.constant dense<0.000000e+00> : vector<34x32xf32>
    %22 = tpu.matmul %20, %21, %cst_22 {dimension_numbers = #tpu.dot_dimension_numbers<[1], [0], [0], [1], [0, 0, 1, 1], [], []>} : vector<34x8xf32>, vector<8x32xf32>, vector<34x32xf32> -> vector<34x32xf32>
    %23 = arith.addf %19, %22 : vector<34x32xf32>
    %c2 = arith.constant 2 : index
    %c0_23 = arith.constant 0 : index
    %24 = tpu.strided_load %arg6[%c2, %c0_23] {strides = array<i32: 2, 1>} : memref<70x8xf32, #tpu.memory_space<vmem>>, vector<34x8xf32>
    %25 = vector.extract_strided_slice %16 {offsets = [16, 0], sizes = [8, 32], strides = [1, 1]} : vector<32x64xf32> to vector<8x32xf32>
    %cst_24 = arith.constant dense<0.000000e+00> : vector<34x32xf32>
    %26 = tpu.matmul %24, %25, %cst_24 {dimension_numbers = #tpu.dot_dimension_numbers<[1], [0], [0], [1], [0, 0, 1, 1], [], []>} : vector<34x8xf32>, vector<8x32xf32>, vector<34x32xf32> -> vector<34x32xf32>
    %27 = arith.addf %23, %26 : vector<34x32xf32>
    %c3 = arith.constant 3 : index
    %c0_25 = arith.constant 0 : index
    %28 = tpu.strided_load %arg6[%c3, %c0_25] {strides = array<i32: 2, 1>} : memref<70x8xf32, #tpu.memory_space<vmem>>, vector<34x8xf32>
    %29 = vector.extract_strided_slice %16 {offsets = [24, 0], sizes = [8, 32], strides = [1, 1]} : vector<32x64xf32> to vector<8x32xf32>
    %cst_26 = arith.constant dense<0.000000e+00> : vector<34x32xf32>
    %30 = tpu.matmul %28, %29, %cst_26 {dimension_numbers = #tpu.dot_dimension_numbers<[1], [0], [0], [1], [0, 0, 1, 1], [], []>} : vector<34x8xf32>, vector<8x32xf32>, vector<34x32xf32> -> vector<34x32xf32>
    %31 = arith.addf %27, %30 : vector<34x32xf32>
    %32 = vector.extract_strided_slice %0 {offsets = [0, 0], sizes = [1, 32], strides = [1, 1]} : vector<10x64xf32> to vector<1x32xf32>
    %33 = vector.broadcast %32 : vector<1x32xf32> to vector<34x32xf32>
    %34 = arith.addf %31, %33 : vector<34x32xf32>
    %35 = vector.broadcast %2 : vector<34x1xf32> to vector<34x32xf32>
    %36 = arith.mulf %34, %35 : vector<34x32xf32>
    %cst_27 = arith.constant dense<0.000000e+00> : vector<32xf32>
    %37 = vector.multi_reduction <add>, %36, %cst_27 [0] : vector<34x32xf32> to vector<32xf32>
    %38 = vector.shape_cast %37 : vector<32xf32> to vector<1x32xf32>
    %cst_28 = arith.constant 3.125000e-02 : f32
    %39 = vector.broadcast %cst_28 : f32 to vector<1x32xf32>
    %40 = arith.mulf %38, %39 : vector<1x32xf32>
    %41 = arith.mulf %36, %36 : vector<34x32xf32>
    %cst_29 = arith.constant dense<0.000000e+00> : vector<32xf32>
    %42 = vector.multi_reduction <add>, %41, %cst_29 [0] : vector<34x32xf32> to vector<32xf32>
    %43 = vector.shape_cast %42 : vector<32xf32> to vector<1x32xf32>
    %cst_30 = arith.constant 3.125000e-02 : f32
    %44 = vector.broadcast %cst_30 : f32 to vector<1x32xf32>
    %45 = arith.mulf %43, %44 : vector<1x32xf32>
    %46 = arith.mulf %40, %40 : vector<1x32xf32>
    %47 = arith.subf %45, %46 : vector<1x32xf32>
    %48 = vector.extract_strided_slice %0 {offsets = [1, 0], sizes = [1, 32], strides = [1, 1]} : vector<10x64xf32> to vector<1x32xf32>
    %cst_31 = arith.constant 9.99999974E-6 : f32
    %49 = vector.broadcast %cst_31 : f32 to vector<1x32xf32>
    %50 = arith.addf %47, %49 : vector<1x32xf32>
    %51 = math.rsqrt %50 : vector<1x32xf32>
    %52 = arith.mulf %48, %51 : vector<1x32xf32>
    %53 = vector.extract_strided_slice %0 {offsets = [2, 0], sizes = [1, 32], strides = [1, 1]} : vector<10x64xf32> to vector<1x32xf32>
    %54 = arith.mulf %40, %52 : vector<1x32xf32>
    %55 = arith.subf %53, %54 : vector<1x32xf32>
    %56 = vector.broadcast %52 : vector<1x32xf32> to vector<34x32xf32>
    %57 = arith.mulf %34, %56 : vector<34x32xf32>
    %58 = vector.broadcast %55 : vector<1x32xf32> to vector<34x32xf32>
    %59 = arith.addf %57, %58 : vector<34x32xf32>
    %60 = vector.extract_strided_slice %59 {offsets = [0, 16], sizes = [34, 16], strides = [1, 1]} : vector<34x32xf32> to vector<34x16xf32>
    %cst_32 = arith.constant 0.000000e+00 : f32
    %61 = vector.broadcast %cst_32 : f32 to vector<34x16xf32>
    %62 = arith.subf %61, %60 : vector<34x16xf32>
    %63 = math.exp %62 : vector<34x16xf32>
    %cst_33 = arith.constant 1.000000e+00 : f32
    %64 = vector.broadcast %cst_33 : f32 to vector<34x16xf32>
    %65 = arith.addf %64, %63 : vector<34x16xf32>
    %66 = tpu.reciprocal %65 {approx = true} : vector<34x16xf32> -> vector<34x16xf32>
    %67 = vector.extract_strided_slice %59 {offsets = [0, 0], sizes = [34, 16], strides = [1, 1]} : vector<34x32xf32> to vector<34x16xf32>
    %68 = arith.mulf %67, %66 : vector<34x16xf32>
    %cst_34 = arith.constant 0.000000e+00 : f32
    %69 = vector.broadcast %cst_34 : f32 to vector<1x16xf32>
    %c0_35 = arith.constant 0 : index
    %c0_36 = arith.constant 0 : index
    %70 = vector.load %arg7[%c0_35, %c0_36] : memref<38x16xf32, #tpu.memory_space<vmem>>, vector<1x16xf32>
    tpu.vector_store %arg7[%c0_35, %c0_36], %69 {strides = array<i32>} : memref<38x16xf32, #tpu.memory_space<vmem>>, vector<1x16xf32>,
    %71 = vector.extract_strided_slice %68 {offsets = [0, 0], sizes = [16, 16], strides = [1, 1]} : vector<34x16xf32> to vector<16x16xf32>
    %c1_37 = arith.constant 1 : index
    %c0_38 = arith.constant 0 : index
    %72 = vector.load %arg7[%c1_37, %c0_38] : memref<38x16xf32, #tpu.memory_space<vmem>>, vector<16x16xf32>
    tpu.vector_store %arg7[%c1_37, %c0_38], %71 {strides = array<i32>} : memref<38x16xf32, #tpu.memory_space<vmem>>, vector<16x16xf32>,
    %c17 = arith.constant 17 : index
    %c0_39 = arith.constant 0 : index
    %73 = vector.load %arg7[%c17, %c0_39] : memref<38x16xf32, #tpu.memory_space<vmem>>, vector<1x16xf32>
    tpu.vector_store %arg7[%c17, %c0_39], %69 {strides = array<i32>} : memref<38x16xf32, #tpu.memory_space<vmem>>, vector<1x16xf32>,
    %c18 = arith.constant 18 : index
    %c0_40 = arith.constant 0 : index
    %74 = vector.load %arg7[%c18, %c0_40] : memref<38x16xf32, #tpu.memory_space<vmem>>, vector<1x16xf32>
    tpu.vector_store %arg7[%c18, %c0_40], %69 {strides = array<i32>} : memref<38x16xf32, #tpu.memory_space<vmem>>, vector<1x16xf32>,
    %75 = vector.extract_strided_slice %68 {offsets = [17, 0], sizes = [16, 16], strides = [1, 1]} : vector<34x16xf32> to vector<16x16xf32>
    %c19 = arith.constant 19 : index
    %c0_41 = arith.constant 0 : index
    %76 = vector.load %arg7[%c19, %c0_41] : memref<38x16xf32, #tpu.memory_space<vmem>>, vector<16x16xf32>
    tpu.vector_store %arg7[%c19, %c0_41], %75 {strides = array<i32>} : memref<38x16xf32, #tpu.memory_space<vmem>>, vector<16x16xf32>,
    %c35_42 = arith.constant 35 : index
    %c0_43 = arith.constant 0 : index
    %77 = vector.load %arg7[%c35_42, %c0_43] : memref<38x16xf32, #tpu.memory_space<vmem>>, vector<1x16xf32>
    tpu.vector_store %arg7[%c35_42, %c0_43], %69 {strides = array<i32>} : memref<38x16xf32, #tpu.memory_space<vmem>>, vector<1x16xf32>,
    %cst_44 = arith.constant 0.000000e+00 : f32
    %78 = vector.broadcast %cst_44 : f32 to vector<2x16xf32>
    %c36 = arith.constant 36 : index
    %c0_45 = arith.constant 0 : index
    %79 = vector.load %arg7[%c36, %c0_45] : memref<38x16xf32, #tpu.memory_space<vmem>>, vector<2x16xf32>
    tpu.vector_store %arg7[%c36, %c0_45], %78 {strides = array<i32>} : memref<38x16xf32, #tpu.memory_space<vmem>>, vector<2x16xf32>,
    %c32_46 = arith.constant 32 : index
    %c0_47 = arith.constant 0 : index
    %80 = vector.load %arg2[%c32_46, %c0_47] : memref<288x64xf32, #tpu.memory_space<vmem>>, vector<64x64xf32>
    %c0_48 = arith.constant 0 : index
    %c0_49 = arith.constant 0 : index
    %81 = tpu.strided_load %arg7[%c0_48, %c0_49] {strides = array<i32: 2, 1>} : memref<38x16xf32, #tpu.memory_space<vmem>>, vector<18x16xf32>
    %82 = vector.extract_strided_slice %80 {offsets = [0, 0], sizes = [16, 64], strides = [1, 1]} : vector<64x64xf32> to vector<16x64xf32>
    %cst_50 = arith.constant dense<0.000000e+00> : vector<18x64xf32>
    %83 = tpu.matmul %81, %82, %cst_50 {dimension_numbers = #tpu.dot_dimension_numbers<[1], [0], [0], [1], [0, 0, 1, 1], [], []>} : vector<18x16xf32>, vector<16x64xf32>, vector<18x64xf32> -> vector<18x64xf32>
    %c1_51 = arith.constant 1 : index
    %c0_52 = arith.constant 0 : index
    %84 = tpu.strided_load %arg7[%c1_51, %c0_52] {strides = array<i32: 2, 1>} : memref<38x16xf32, #tpu.memory_space<vmem>>, vector<18x16xf32>
    %85 = vector.extract_strided_slice %80 {offsets = [16, 0], sizes = [16, 64], strides = [1, 1]} : vector<64x64xf32> to vector<16x64xf32>
    %cst_53 = arith.constant dense<0.000000e+00> : vector<18x64xf32>
    %86 = tpu.matmul %84, %85, %cst_53 {dimension_numbers = #tpu.dot_dimension_numbers<[1], [0], [0], [1], [0, 0, 1, 1], [], []>} : vector<18x16xf32>, vector<16x64xf32>, vector<18x64xf32> -> vector<18x64xf32>
    %87 = arith.addf %83, %86 : vector<18x64xf32>
    %c2_54 = arith.constant 2 : index
    %c0_55 = arith.constant 0 : index
    %88 = tpu.strided_load %arg7[%c2_54, %c0_55] {strides = array<i32: 2, 1>} : memref<38x16xf32, #tpu.memory_space<vmem>>, vector<18x16xf32>
    %89 = vector.extract_strided_slice %80 {offsets = [32, 0], sizes = [16, 64], strides = [1, 1]} : vector<64x64xf32> to vector<16x64xf32>
    %cst_56 = arith.constant dense<0.000000e+00> : vector<18x64xf32>
    %90 = tpu.matmul %88, %89, %cst_56 {dimension_numbers = #tpu.dot_dimension_numbers<[1], [0], [0], [1], [0, 0, 1, 1], [], []>} : vector<18x16xf32>, vector<16x64xf32>, vector<18x64xf32> -> vector<18x64xf32>
    %91 = arith.addf %87, %90 : vector<18x64xf32>
    %c3_57 = arith.constant 3 : index
    %c0_58 = arith.constant 0 : index
    %92 = tpu.strided_load %arg7[%c3_57, %c0_58] {strides = array<i32: 2, 1>} : memref<38x16xf32, #tpu.memory_space<vmem>>, vector<18x16xf32>
    %93 = vector.extract_strided_slice %80 {offsets = [48, 0], sizes = [16, 64], strides = [1, 1]} : vector<64x64xf32> to vector<16x64xf32>
    %cst_59 = arith.constant dense<0.000000e+00> : vector<18x64xf32>
    %94 = tpu.matmul %92, %93, %cst_59 {dimension_numbers = #tpu.dot_dimension_numbers<[1], [0], [0], [1], [0, 0, 1, 1], [], []>} : vector<18x16xf32>, vector<16x64xf32>, vector<18x64xf32> -> vector<18x64xf32>
    %95 = arith.addf %91, %94 : vector<18x64xf32>
    %96 = vector.extract_strided_slice %0 {offsets = [3, 0], sizes = [1, 64], strides = [1, 1]} : vector<10x64xf32> to vector<1x64xf32>
    %97 = vector.broadcast %96 : vector<1x64xf32> to vector<18x64xf32>
    %98 = arith.addf %95, %97 : vector<18x64xf32>
    %99 = vector.broadcast %3 : vector<18x1xf32> to vector<18x64xf32>
    %100 = arith.mulf %98, %99 : vector<18x64xf32>
    %cst_60 = arith.constant dense<0.000000e+00> : vector<64xf32>
    %101 = vector.multi_reduction <add>, %100, %cst_60 [0] : vector<18x64xf32> to vector<64xf32>
    %102 = vector.shape_cast %101 : vector<64xf32> to vector<1x64xf32>
    %cst_61 = arith.constant 6.250000e-02 : f32
    %103 = vector.broadcast %cst_61 : f32 to vector<1x64xf32>
    %104 = arith.mulf %102, %103 : vector<1x64xf32>
    %105 = arith.mulf %100, %100 : vector<18x64xf32>
    %cst_62 = arith.constant dense<0.000000e+00> : vector<64xf32>
    %106 = vector.multi_reduction <add>, %105, %cst_62 [0] : vector<18x64xf32> to vector<64xf32>
    %107 = vector.shape_cast %106 : vector<64xf32> to vector<1x64xf32>
    %cst_63 = arith.constant 6.250000e-02 : f32
    %108 = vector.broadcast %cst_63 : f32 to vector<1x64xf32>
    %109 = arith.mulf %107, %108 : vector<1x64xf32>
    %110 = arith.mulf %104, %104 : vector<1x64xf32>
    %111 = arith.subf %109, %110 : vector<1x64xf32>
    %112 = vector.extract_strided_slice %0 {offsets = [4, 0], sizes = [1, 64], strides = [1, 1]} : vector<10x64xf32> to vector<1x64xf32>
    %cst_64 = arith.constant 9.99999974E-6 : f32
    %113 = vector.broadcast %cst_64 : f32 to vector<1x64xf32>
    %114 = arith.addf %111, %113 : vector<1x64xf32>
    %115 = math.rsqrt %114 : vector<1x64xf32>
    %116 = arith.mulf %112, %115 : vector<1x64xf32>
    %117 = vector.extract_strided_slice %0 {offsets = [5, 0], sizes = [1, 64], strides = [1, 1]} : vector<10x64xf32> to vector<1x64xf32>
    %118 = arith.mulf %104, %116 : vector<1x64xf32>
    %119 = arith.subf %117, %118 : vector<1x64xf32>
    %120 = vector.broadcast %116 : vector<1x64xf32> to vector<18x64xf32>
    %121 = arith.mulf %98, %120 : vector<18x64xf32>
    %122 = vector.broadcast %119 : vector<1x64xf32> to vector<18x64xf32>
    %123 = arith.addf %121, %122 : vector<18x64xf32>
    %124 = vector.extract_strided_slice %123 {offsets = [0, 32], sizes = [18, 32], strides = [1, 1]} : vector<18x64xf32> to vector<18x32xf32>
    %cst_65 = arith.constant 0.000000e+00 : f32
    %125 = vector.broadcast %cst_65 : f32 to vector<18x32xf32>
    %126 = arith.subf %125, %124 : vector<18x32xf32>
    %127 = math.exp %126 : vector<18x32xf32>
    %cst_66 = arith.constant 1.000000e+00 : f32
    %128 = vector.broadcast %cst_66 : f32 to vector<18x32xf32>
    %129 = arith.addf %128, %127 : vector<18x32xf32>
    %130 = tpu.reciprocal %129 {approx = true} : vector<18x32xf32> -> vector<18x32xf32>
    %131 = vector.extract_strided_slice %123 {offsets = [0, 0], sizes = [18, 32], strides = [1, 1]} : vector<18x64xf32> to vector<18x32xf32>
    %132 = arith.mulf %131, %130 : vector<18x32xf32>
    %cst_67 = arith.constant 0.000000e+00 : f32
    %133 = vector.broadcast %cst_67 : f32 to vector<1x32xf32>
    %c0_68 = arith.constant 0 : index
    %c0_69 = arith.constant 0 : index
    %134 = vector.load %arg8[%c0_68, %c0_69] : memref<22x32xf32, #tpu.memory_space<vmem>>, vector<1x32xf32>
    tpu.vector_store %arg8[%c0_68, %c0_69], %133 {strides = array<i32>} : memref<22x32xf32, #tpu.memory_space<vmem>>, vector<1x32xf32>,
    %135 = vector.extract_strided_slice %132 {offsets = [0, 0], sizes = [8, 32], strides = [1, 1]} : vector<18x32xf32> to vector<8x32xf32>
    %c1_70 = arith.constant 1 : index
    %c0_71 = arith.constant 0 : index
    %136 = vector.load %arg8[%c1_70, %c0_71] : memref<22x32xf32, #tpu.memory_space<vmem>>, vector<8x32xf32>
    tpu.vector_store %arg8[%c1_70, %c0_71], %135 {strides = array<i32>} : memref<22x32xf32, #tpu.memory_space<vmem>>, vector<8x32xf32>,
    %c9 = arith.constant 9 : index
    %c0_72 = arith.constant 0 : index
    %137 = vector.load %arg8[%c9, %c0_72] : memref<22x32xf32, #tpu.memory_space<vmem>>, vector<1x32xf32>
    tpu.vector_store %arg8[%c9, %c0_72], %133 {strides = array<i32>} : memref<22x32xf32, #tpu.memory_space<vmem>>, vector<1x32xf32>,
    %c10 = arith.constant 10 : index
    %c0_73 = arith.constant 0 : index
    %138 = vector.load %arg8[%c10, %c0_73] : memref<22x32xf32, #tpu.memory_space<vmem>>, vector<1x32xf32>
    tpu.vector_store %arg8[%c10, %c0_73], %133 {strides = array<i32>} : memref<22x32xf32, #tpu.memory_space<vmem>>, vector<1x32xf32>,
    %139 = vector.extract_strided_slice %132 {offsets = [9, 0], sizes = [8, 32], strides = [1, 1]} : vector<18x32xf32> to vector<8x32xf32>
    %c11 = arith.constant 11 : index
    %c0_74 = arith.constant 0 : index
    %140 = vector.load %arg8[%c11, %c0_74] : memref<22x32xf32, #tpu.memory_space<vmem>>, vector<8x32xf32>
    tpu.vector_store %arg8[%c11, %c0_74], %139 {strides = array<i32>} : memref<22x32xf32, #tpu.memory_space<vmem>>, vector<8x32xf32>,
    %c19_75 = arith.constant 19 : index
    %c0_76 = arith.constant 0 : index
    %141 = vector.load %arg8[%c19_75, %c0_76] : memref<22x32xf32, #tpu.memory_space<vmem>>, vector<1x32xf32>
    tpu.vector_store %arg8[%c19_75, %c0_76], %133 {strides = array<i32>} : memref<22x32xf32, #tpu.memory_space<vmem>>, vector<1x32xf32>,
    %cst_77 = arith.constant 0.000000e+00 : f32
    %142 = vector.broadcast %cst_77 : f32 to vector<2x32xf32>
    %c20 = arith.constant 20 : index
    %c0_78 = arith.constant 0 : index
    %143 = vector.load %arg8[%c20, %c0_78] : memref<22x32xf32, #tpu.memory_space<vmem>>, vector<2x32xf32>
    tpu.vector_store %arg8[%c20, %c0_78], %142 {strides = array<i32>} : memref<22x32xf32, #tpu.memory_space<vmem>>, vector<2x32xf32>,
    %c96 = arith.constant 96 : index
    %c0_79 = arith.constant 0 : index
    %144 = vector.load %arg2[%c96, %c0_79] : memref<288x64xf32, #tpu.memory_space<vmem>>, vector<128x64xf32>
    %c0_80 = arith.constant 0 : index
    %c0_81 = arith.constant 0 : index
    %145 = tpu.strided_load %arg8[%c0_80, %c0_81] {strides = array<i32: 2, 1>} : memref<22x32xf32, #tpu.memory_space<vmem>>, vector<10x32xf32>
    %146 = vector.extract_strided_slice %144 {offsets = [0, 0], sizes = [32, 32], strides = [1, 1]} : vector<128x64xf32> to vector<32x32xf32>
    %cst_82 = arith.constant dense<0.000000e+00> : vector<10x32xf32>
    %147 = tpu.matmul %145, %146, %cst_82 {dimension_numbers = #tpu.dot_dimension_numbers<[1], [0], [0], [1], [0, 0, 1, 1], [], []>} : vector<10x32xf32>, vector<32x32xf32>, vector<10x32xf32> -> vector<10x32xf32>
    %c1_83 = arith.constant 1 : index
    %c0_84 = arith.constant 0 : index
    %148 = tpu.strided_load %arg8[%c1_83, %c0_84] {strides = array<i32: 2, 1>} : memref<22x32xf32, #tpu.memory_space<vmem>>, vector<10x32xf32>
    %149 = vector.extract_strided_slice %144 {offsets = [32, 0], sizes = [32, 32], strides = [1, 1]} : vector<128x64xf32> to vector<32x32xf32>
    %cst_85 = arith.constant dense<0.000000e+00> : vector<10x32xf32>
    %150 = tpu.matmul %148, %149, %cst_85 {dimension_numbers = #tpu.dot_dimension_numbers<[1], [0], [0], [1], [0, 0, 1, 1], [], []>} : vector<10x32xf32>, vector<32x32xf32>, vector<10x32xf32> -> vector<10x32xf32>
    %151 = arith.addf %147, %150 : vector<10x32xf32>
    %c2_86 = arith.constant 2 : index
    %c0_87 = arith.constant 0 : index
    %152 = tpu.strided_load %arg8[%c2_86, %c0_87] {strides = array<i32: 2, 1>} : memref<22x32xf32, #tpu.memory_space<vmem>>, vector<10x32xf32>
    %153 = vector.extract_strided_slice %144 {offsets = [64, 0], sizes = [32, 32], strides = [1, 1]} : vector<128x64xf32> to vector<32x32xf32>
    %cst_88 = arith.constant dense<0.000000e+00> : vector<10x32xf32>
    %154 = tpu.matmul %152, %153, %cst_88 {dimension_numbers = #tpu.dot_dimension_numbers<[1], [0], [0], [1], [0, 0, 1, 1], [], []>} : vector<10x32xf32>, vector<32x32xf32>, vector<10x32xf32> -> vector<10x32xf32>
    %155 = arith.addf %151, %154 : vector<10x32xf32>
    %c3_89 = arith.constant 3 : index
    %c0_90 = arith.constant 0 : index
    %156 = tpu.strided_load %arg8[%c3_89, %c0_90] {strides = array<i32: 2, 1>} : memref<22x32xf32, #tpu.memory_space<vmem>>, vector<10x32xf32>
    %157 = vector.extract_strided_slice %144 {offsets = [96, 0], sizes = [32, 32], strides = [1, 1]} : vector<128x64xf32> to vector<32x32xf32>
    %cst_91 = arith.constant dense<0.000000e+00> : vector<10x32xf32>
    %158 = tpu.matmul %156, %157, %cst_91 {dimension_numbers = #tpu.dot_dimension_numbers<[1], [0], [0], [1], [0, 0, 1, 1], [], []>} : vector<10x32xf32>, vector<32x32xf32>, vector<10x32xf32> -> vector<10x32xf32>
    %159 = arith.addf %155, %158 : vector<10x32xf32>
    %160 = vector.extract_strided_slice %0 {offsets = [6, 0], sizes = [1, 32], strides = [1, 1]} : vector<10x64xf32> to vector<1x32xf32>
    %161 = vector.broadcast %160 : vector<1x32xf32> to vector<10x32xf32>
    %162 = arith.addf %159, %161 : vector<10x32xf32>
    %163 = vector.broadcast %4 : vector<10x1xf32> to vector<10x32xf32>
    %164 = arith.mulf %162, %163 : vector<10x32xf32>
    %cst_92 = arith.constant dense<0.000000e+00> : vector<32xf32>
    %165 = vector.multi_reduction <add>, %164, %cst_92 [0] : vector<10x32xf32> to vector<32xf32>
    %166 = vector.shape_cast %165 : vector<32xf32> to vector<1x32xf32>
    %cst_93 = arith.constant 1.250000e-01 : f32
    %167 = vector.broadcast %cst_93 : f32 to vector<1x32xf32>
    %168 = arith.mulf %166, %167 : vector<1x32xf32>
    %169 = arith.mulf %164, %164 : vector<10x32xf32>
    %cst_94 = arith.constant dense<0.000000e+00> : vector<32xf32>
    %170 = vector.multi_reduction <add>, %169, %cst_94 [0] : vector<10x32xf32> to vector<32xf32>
    %171 = vector.shape_cast %170 : vector<32xf32> to vector<1x32xf32>
    %cst_95 = arith.constant 1.250000e-01 : f32
    %172 = vector.broadcast %cst_95 : f32 to vector<1x32xf32>
    %173 = arith.mulf %171, %172 : vector<1x32xf32>
    %174 = arith.mulf %168, %168 : vector<1x32xf32>
    %175 = arith.subf %173, %174 : vector<1x32xf32>
    %176 = vector.extract_strided_slice %0 {offsets = [7, 0], sizes = [1, 32], strides = [1, 1]} : vector<10x64xf32> to vector<1x32xf32>
    %cst_96 = arith.constant 9.99999974E-6 : f32
    %177 = vector.broadcast %cst_96 : f32 to vector<1x32xf32>
    %178 = arith.addf %175, %177 : vector<1x32xf32>
    %179 = math.rsqrt %178 : vector<1x32xf32>
    %180 = arith.mulf %176, %179 : vector<1x32xf32>
    %181 = vector.extract_strided_slice %0 {offsets = [8, 0], sizes = [1, 32], strides = [1, 1]} : vector<10x64xf32> to vector<1x32xf32>
    %182 = arith.mulf %168, %180 : vector<1x32xf32>
    %183 = arith.subf %181, %182 : vector<1x32xf32>
    %184 = vector.broadcast %180 : vector<1x32xf32> to vector<10x32xf32>
    %185 = arith.mulf %162, %184 : vector<10x32xf32>
    %186 = vector.broadcast %183 : vector<1x32xf32> to vector<10x32xf32>
    %187 = arith.addf %185, %186 : vector<10x32xf32>
    %188 = vector.extract_strided_slice %187 {offsets = [0, 16], sizes = [10, 16], strides = [1, 1]} : vector<10x32xf32> to vector<10x16xf32>
    %cst_97 = arith.constant 0.000000e+00 : f32
    %189 = vector.broadcast %cst_97 : f32 to vector<10x16xf32>
    %190 = arith.subf %189, %188 : vector<10x16xf32>
    %191 = math.exp %190 : vector<10x16xf32>
    %cst_98 = arith.constant 1.000000e+00 : f32
    %192 = vector.broadcast %cst_98 : f32 to vector<10x16xf32>
    %193 = arith.addf %192, %191 : vector<10x16xf32>
    %194 = tpu.reciprocal %193 {approx = true} : vector<10x16xf32> -> vector<10x16xf32>
    %195 = vector.extract_strided_slice %187 {offsets = [0, 0], sizes = [10, 16], strides = [1, 1]} : vector<10x32xf32> to vector<10x16xf32>
    %196 = arith.mulf %195, %194 : vector<10x16xf32>
    %197 = vector.extract_strided_slice %196 {offsets = [0, 0], sizes = [4, 16], strides = [1, 1]} : vector<10x16xf32> to vector<4x16xf32>
    %c0_99 = arith.constant 0 : index
    %c0_100 = arith.constant 0 : index
    %198 = vector.load %arg9[%c0_99, %c0_100] : memref<8x16xf32, #tpu.memory_space<vmem>>, vector<4x16xf32>
    tpu.vector_store %arg9[%c0_99, %c0_100], %197 {strides = array<i32>} : memref<8x16xf32, #tpu.memory_space<vmem>>, vector<4x16xf32>,
    %199 = vector.extract_strided_slice %196 {offsets = [5, 0], sizes = [4, 16], strides = [1, 1]} : vector<10x16xf32> to vector<4x16xf32>
    %c4 = arith.constant 4 : index
    %c0_101 = arith.constant 0 : index
    %200 = vector.load %arg9[%c4, %c0_101] : memref<8x16xf32, #tpu.memory_space<vmem>>, vector<4x16xf32>
    tpu.vector_store %arg9[%c4, %c0_101], %199 {strides = array<i32>} : memref<8x16xf32, #tpu.memory_space<vmem>>, vector<4x16xf32>,
    %c224 = arith.constant 224 : index
    %c0_102 = arith.constant 0 : index
    %201 = vector.load %arg2[%c224, %c0_102] : memref<288x64xf32, #tpu.memory_space<vmem>>, vector<64x64xf32>
    %c0_103 = arith.constant 0 : index
    %c0_104 = arith.constant 0 : index
    %202 = tpu.strided_load %arg9[%c0_103, %c0_104] {strides = array<i32: 4, 1>} : memref<8x16xf32, #tpu.memory_space<vmem>>, vector<2x16xf32>
    %203 = vector.extract_strided_slice %201 {offsets = [0, 0], sizes = [16, 4], strides = [1, 1]} : vector<64x64xf32> to vector<16x4xf32>
    %cst_105 = arith.constant dense<0.000000e+00> : vector<2x4xf32>
    %204 = tpu.matmul %202, %203, %cst_105 {dimension_numbers = #tpu.dot_dimension_numbers<[1], [0], [0], [1], [0, 0, 1, 1], [], []>} : vector<2x16xf32>, vector<16x4xf32>, vector<2x4xf32> -> vector<2x4xf32>
    %c1_106 = arith.constant 1 : index
    %c0_107 = arith.constant 0 : index
    %205 = tpu.strided_load %arg9[%c1_106, %c0_107] {strides = array<i32: 4, 1>} : memref<8x16xf32, #tpu.memory_space<vmem>>, vector<2x16xf32>
    %206 = vector.extract_strided_slice %201 {offsets = [16, 0], sizes = [16, 4], strides = [1, 1]} : vector<64x64xf32> to vector<16x4xf32>
    %cst_108 = arith.constant dense<0.000000e+00> : vector<2x4xf32>
    %207 = tpu.matmul %205, %206, %cst_108 {dimension_numbers = #tpu.dot_dimension_numbers<[1], [0], [0], [1], [0, 0, 1, 1], [], []>} : vector<2x16xf32>, vector<16x4xf32>, vector<2x4xf32> -> vector<2x4xf32>
    %208 = arith.addf %204, %207 : vector<2x4xf32>
    %c2_109 = arith.constant 2 : index
    %c0_110 = arith.constant 0 : index
    %209 = tpu.strided_load %arg9[%c2_109, %c0_110] {strides = array<i32: 4, 1>} : memref<8x16xf32, #tpu.memory_space<vmem>>, vector<2x16xf32>
    %210 = vector.extract_strided_slice %201 {offsets = [32, 0], sizes = [16, 4], strides = [1, 1]} : vector<64x64xf32> to vector<16x4xf32>
    %cst_111 = arith.constant dense<0.000000e+00> : vector<2x4xf32>
    %211 = tpu.matmul %209, %210, %cst_111 {dimension_numbers = #tpu.dot_dimension_numbers<[1], [0], [0], [1], [0, 0, 1, 1], [], []>} : vector<2x16xf32>, vector<16x4xf32>, vector<2x4xf32> -> vector<2x4xf32>
    %212 = arith.addf %208, %211 : vector<2x4xf32>
    %c3_112 = arith.constant 3 : index
    %c0_113 = arith.constant 0 : index
    %213 = tpu.strided_load %arg9[%c3_112, %c0_113] {strides = array<i32: 4, 1>} : memref<8x16xf32, #tpu.memory_space<vmem>>, vector<2x16xf32>
    %214 = vector.extract_strided_slice %201 {offsets = [48, 0], sizes = [16, 4], strides = [1, 1]} : vector<64x64xf32> to vector<16x4xf32>
    %cst_114 = arith.constant dense<0.000000e+00> : vector<2x4xf32>
    %215 = tpu.matmul %213, %214, %cst_114 {dimension_numbers = #tpu.dot_dimension_numbers<[1], [0], [0], [1], [0, 0, 1, 1], [], []>} : vector<2x16xf32>, vector<16x4xf32>, vector<2x4xf32> -> vector<2x4xf32>
    %216 = arith.addf %212, %215 : vector<2x4xf32>
    %217 = vector.extract_strided_slice %0 {offsets = [9, 0], sizes = [1, 4], strides = [1, 1]} : vector<10x64xf32> to vector<1x4xf32>
    %218 = vector.broadcast %217 : vector<1x4xf32> to vector<2x4xf32>
    %219 = arith.addf %216, %218 : vector<2x4xf32>
    %cst_115 = arith.constant dense<0xFF800000> : vector<2xf32>
    %220 = vector.multi_reduction <maximumf>, %219, %cst_115 [1] : vector<2x4xf32> to vector<2xf32>
    %221 = vector.shape_cast %220 : vector<2xf32> to vector<2x1xf32>
    %222 = vector.broadcast %221 : vector<2x1xf32> to vector<2x4xf32>
    %223 = arith.subf %219, %222 : vector<2x4xf32>
    %224 = math.exp %223 : vector<2x4xf32>
    %cst_116 = arith.constant dense<0.000000e+00> : vector<2xf32>
    %225 = vector.multi_reduction <add>, %224, %cst_116 [1] : vector<2x4xf32> to vector<2xf32>
    %226 = vector.shape_cast %225 : vector<2xf32> to vector<2x1xf32>
    %227 = math.log %226 : vector<2x1xf32>
    %228 = vector.broadcast %227 : vector<2x1xf32> to vector<2x4xf32>
    %229 = arith.subf %223, %228 : vector<2x4xf32>
    %c0_117 = arith.constant 0 : index
    %c0_118 = arith.constant 0 : index
    %230 = vector.load %arg5[%c0_117, %c0_118] : memref<2x4xf32, #tpu.memory_space<vmem>>, vector<2x4xf32>
    tpu.vector_store %arg5[%c0_117, %c0_118], %229 {strides = array<i32>} : memref<2x4xf32, #tpu.memory_space<vmem>>, vector<2x4xf32>,
    return
  }
  func.func @transform_0(%arg0: i32) -> (i32, i32) {
    %c0_i32 = arith.constant 0 : i32
    %c0_i32_0 = arith.constant 0 : i32
    %c0_i32_1 = arith.constant 0 : i32
    return %c0_i32, %c0_i32_0 : i32, i32
  }
  func.func @transform_1(%arg0: i32) -> (i32, i32) {
    %c0_i32 = arith.constant 0 : i32
    %c0_i32_0 = arith.constant 0 : i32
    %c0_i32_1 = arith.constant 0 : i32
    return %c0_i32, %c0_i32_0 : i32, i32
  }
  func.func @transform_2(%arg0: i32) -> (i32, i32) {
    %c0_i32 = arith.constant 0 : i32
    %c0_i32_0 = arith.constant 0 : i32
    %c0_i32_1 = arith.constant 0 : i32
    return %c0_i32, %c0_i32_0 : i32, i32
  }
  func.func @transform_3(%arg0: i32) -> (i32, i32) {
    %c0_i32 = arith.constant 0 : i32
    %c0_i32_0 = arith.constant 0 : i32
    %c0_i32_1 = arith.constant 0 : i32
    return %c0_i32, %c0_i32_0 : i32, i32
  }
  func.func @transform_4(%arg0: i32) -> (i32, i32) {
    %c0_i32 = arith.constant 0 : i32
    %c0_i32_0 = arith.constant 0 : i32
    %c0_i32_1 = arith.constant 0 : i32
    return %c0_i32, %c0_i32_0 : i32, i32
  }
}

</mosaic_0001>

<llo_original>
// kernel: latent_classifier_forward.1
$region0: #{latent_classifier_forward.1}
  #allocation0 [shape = 'u32[]', space=smem, size = 0x4, offset = 0x4, fixed_abs, tag = 'smem constant byte address 0x4 - core index']
  #allocation1 [shape = 'u32[144,128]{1,0:T(1,128)}', space=vmem, size = 0x12000, scoped, tag = 'internal scratch']
  #allocation2 [shape = 'f32[70,8]{1,0:T(8,128)}', space=vmem, size = 0x9000, scoped, tag = 'scratch operand']
  #allocation3 [shape = 'f32[38,16]{1,0:T(8,128)}', space=vmem, size = 0x5000, scoped, tag = 'scratch operand']
  #allocation4 [shape = 'f32[22,32]{1,0:T(8,128)}', space=vmem, size = 0x3000, scoped, tag = 'scratch operand']
  #allocation5 [shape = 'f32[8,16]{1,0:T(8,128)}', space=vmem, size = 0x1000, scoped, tag = 'scratch operand']
  %s0 = inlined_call_operand.vmem [shape: f32[64,8], index: 0, kind: input, shape index: {}]
  %s1 = inlined_call_operand.vmem [shape: f32[288,64], index: 1, kind: input, shape index: {}]
  %s2 = inlined_call_operand.vmem [shape: f32[10,64], index: 2, kind: input, shape index: {}]
  %s3 = inlined_call_operand.vmem [shape: f32[62,1], index: 3, kind: input, shape index: {}]
  %s4 = inlined_call_operand.hbm [shape: f32[2,4], index: 4, kind: output, shape index: {}]
  %s5 = sld [smem:[#allocation0]]
  $region26: #{latent_classifier_forward.1} parent=0
    _
  %s7 = ssub.s32 1, %s5
  %s8 = scalar_select 0, %s7, %s5
  $region1: #{latent_classifier_forward.1} parent=0
    #allocation6 [shape = 'u8[1024]{0}', space=vmem, size = 0x400, scoped, tag = 'output window, operand 0, single buffered']
    #allocation7 [shape = 's32[1]{0}', space=sflag, size = 0x4, scoped, tag = 'scoped memory for latent_classifier_forward.1']
    %9 = vsyncpa [#allocation7], 0
    // Predicated region
    $region2: #{latent_classifier_forward.1} parent=1 // pred_check
      _
    $region3: #{latent_classifier_forward.1} parent=1 // pred_check_branch
      %11 = sbr.rel (0) target = $region5
    $region4: #{latent_classifier_forward.1} parent=1 // pred_region
      _
    $region5: #{latent_classifier_forward.1} parent=1 // pred_fallthru
      _
    // Predicated region
    $region6: #{latent_classifier_forward.1} parent=1 // pred_check
      _
    $region7: #{latent_classifier_forward.1} parent=1 // pred_check_branch
      %13 = sbr.rel (0) target = $region9
    $region8: #{latent_classifier_forward.1} parent=1 // pred_region
      _
    $region9: #{latent_classifier_forward.1} parent=1 // pred_fallthru
      _
    // Predicated region
    $region10: #{latent_classifier_forward.1} parent=1 // pred_check
      _
    $region11: #{latent_classifier_forward.1} parent=1 // pred_check_branch
      %15 = sbr.rel (0) target = $region13
    $region12: #{latent_classifier_forward.1} parent=1 // pred_region
      _
    $region13: #{latent_classifier_forward.1} parent=1 // pred_fallthru
      _
    // Predicated region
    $region14: #{latent_classifier_forward.1} parent=1 // pred_check
      _
    $region15: #{latent_classifier_forward.1} parent=1 // pred_check_branch
      %17 = sbr.rel (0) target = $region17
    $region16: #{latent_classifier_forward.1} parent=1 // pred_region
      _
    $region17: #{latent_classifier_forward.1} parent=1 // pred_fallthru
      _
    %v18 = vld [vmem:[%s2] sm:$0xff]
    %v19 = vld [vmem:[%s2 + $0x8] sm:$0x3]
    %v20 = vld [vmem:[%s3] sm:$0xff]
    %v21 = vld [vmem:[%s3 + $0x8] sm:$0xff]
    %v22 = vld [vmem:[%s3 + $0x10] sm:$0xff]
    %v23 = vld [vmem:[%s3 + $0x18] sm:$0xff]
    %v24 = vld [vmem:[%s3 + $0x20] sm:$0xff]
    %v25 = vld [vmem:[%s3 + $0x28] sm:$0xff]
    %v26 = vld [vmem:[%s3 + $0x30] sm:$0xff]
    %v27 = vld [vmem:[%s3 + $0x38] sm:$0x3f]
    %vm28 = vcmask 57344
    %29 = vst.msk [vmem:[#allocation2] sm:$0x1] %vm28, 0.0
    %v30 = vld [vmem:[%s0] sm:$0xff]
    %v31 = vld [vmem:[%s0 + $0x8] sm:$0xff]
    %v32 = vld [vmem:[%s0 + $0x10] sm:$0xff]
    %v33 = vld [vmem:[%s0 + $0x18] sm:$0xff]
    %vm34 = vcmask 64512
    %35 = vst.msk [vmem:[#allocation2 + $0x1] sm:$0xff] %vm34, %v30
    %36 = vst.msk [vmem:[#allocation2 + $0x9] sm:$0xff] %vm34, %v31
    %37 = vst.msk [vmem:[#allocation2 + $0x11] sm:$0xff] %vm34, %v32
    %38 = vst.msk [vmem:[#allocation2 + $0x19] sm:$0xff] %vm34, %v33
    %39 = vst.msk [vmem:[#allocation2 + $0x21] sm:$0x1] %vm28, 0.0
    %40 = vst.msk [vmem:[#allocation2 + $0x22] sm:$0x1] %vm28, 0.0
    %v41 = vld [vmem:[%s0 + $0x20] sm:$0xff]
    %v42 = vld [vmem:[%s0 + $0x28] sm:$0xff]
    %v43 = vld [vmem:[%s0 + $0x30] sm:$0xff]
    %v44 = vld [vmem:[%s0 + $0x38] sm:$0xff]
    %45 = vst.msk [vmem:[#allocation2 + $0x23] sm:$0xff] %vm34, %v41
    %46 = vst.msk [vmem:[#allocation2 + $0x2b] sm:$0xff] %vm34, %v42
    %47 = vst.msk [vmem:[#allocation2 + $0x33] sm:$0xff] %vm34, %v43
    %48 = vst.msk [vmem:[#allocation2 + $0x3b] sm:$0xff] %vm34, %v44
    %49 = vst.msk [vmem:[#allocation2 + $0x43] sm:$0x1] %vm28, 0.0
    %vm50 = vcmask 58368
    %51 = vst.msk [vmem:[#allocation2 + $0x44] sm:$0x3] %vm50, 0.0
    %v52 = vld [vmem:[%s1] sm:$0xff]
    %v53 = vld [vmem:[%s1 + $0x8] sm:$0xff]
    %v54 = vld [vmem:[%s1 + $0x10] sm:$0xff]
    %v55 = vld [vmem:[%s1 + $0x18] sm:$0xff]
    %v56 = vld [vmem:[#allocation2] ss:$2 sm:$0xff]
    %s57 = scalar_lea.vmem [#allocation2], 16
    %v58 = vld [vmem:[%s57] ss:$2 sm:$0xff]
    %s59 = scalar_lea.vmem [#allocation2], 32
    %v60 = vld [vmem:[%s59] ss:$2 sm:$0xff]
    %s61 = scalar_lea.vmem [#allocation2], 48
    %v62 = vld [vmem:[%s61] ss:$2 sm:$0xff]
    %s63 = scalar_lea.vmem [#allocation2], 64
    %v64 = vld [vmem:[%s63] ss:$2 sm:$0x3]
    %s65 = scalar_lea.vmem [#allocation2], 1
    %v66 = vld [vmem:[%s65] ss:$2 sm:$0xff]
    %s67 = scalar_lea.vmem [#allocation2], 17
    %v68 = vld [vmem:[%s67] ss:$2 sm:$0xff]
    %s69 = scalar_lea.vmem [#allocation2], 33
    %v70 = vld [vmem:[%s69] ss:$2 sm:$0xff]
    %s71 = scalar_lea.vmem [#allocation2], 49
    %v72 = vld [vmem:[%s71] ss:$2 sm:$0xff]
    %s73 = scalar_lea.vmem [#allocation2], 65
    %v74 = vld [vmem:[%s73] ss:$2 sm:$0x3]
    %v76 = vsel %vm34, %v66, 0
    %v79 = vsel %vm34, %v68, 0
    %v82 = vsel %vm34, %v70, 0
    %v85 = vsel %vm34, %v72, 0
    %v88 = vsel %vm34, %v74, 0
    %90 = vmatprep.subr.mxu0 0.0
    %91 = vmatpush1.msra.mxu0 %v53
    %92 = vmatprep.subr.mxu0 0.0
    %93 = vmatpush1.msra.mxu0 0.0
    %94 = vmatprep.subr.mxu0 0.0
    %95 = vmatpush1.msra.mxu0 0.0
    %96 = vmatprep.subr.mxu0 0.0
    %97 = vmatpush1.msra.mxu0 0.0
    %98 = vmatprep.subr.mxu0 0.0
    %99 = vmatpush1.msra.mxu0 0.0
    %100 = vmatprep.subr.mxu0 0.0
    %101 = vmatpush1.msra.mxu0 0.0
    %102 = vmatprep.subr.mxu0 0.0
    %103 = vmatpush1.msra.mxu0 0.0
    %104 = vmatprep.subr.mxu0 0.0
    %105 = vmatpush1.msra.mxu0 0.0
    %106 = vmatprep.subr.mxu0 0.0
    %107 = vmatpush1.msra.mxu0 0.0
    %108 = vmatprep.subr.mxu0 0.0
    %109 = vmatpush1.msra.mxu0 0.0
    %110 = vmatprep.subr.mxu0 0.0
    %111 = vmatpush1.msra.mxu0 0.0
    %112 = vmatprep.subr.mxu0 0.0
    %113 = vmatpush1.msra.mxu0 0.0
    %114 = vmatprep.subr.mxu0 0.0
    %115 = vmatpush1.msra.mxu0 0.0
    %116 = vmatprep.subr.mxu0 0.0
    %117 = vmatpush1.msra.mxu0 0.0
    %118 = vmatprep.subr.mxu0 0.0
    %119 = vmatpush1.msra.mxu0 0.0
    %120 = vmatprep.subr.mxu0 0.0
    %121 = vmatpush1.msra.mxu0 0.0
    %122 = vmatprep.subr.mxu0 0.0
    %123 = vmatpush1.msra.mxu0 0.0
    %124 = vmatprep.subr.mxu0 0.0
    %125 = vmatpush1.msra.mxu0 0.0
    %126 = vmatprep.subr.mxu0 0.0
    %127 = vmatpush1.msra.mxu0 0.0
    %128 = vmatprep.subr.mxu0 0.0
    %129 = vmatpush1.msra.mxu0 0.0
    %130 = vmatprep.subr.mxu0 0.0
    %131 = vmatpush1.msra.mxu0 0.0
    %132 = vmatprep.subr.mxu0 0.0
    %133 = vmatpush1.msra.mxu0 0.0
    %134 = vmatprep.subr.mxu0 0.0
    %135 = vmatpush1.msra.mxu0 0.0
    %136 = vmatprep.subr.mxu0 0.0
    %137 = vmatpush1.msra.mxu0 0.0
    %138 = vmatprep.subr.mxu0 0.0
    %139 = vmatpush1.msra.mxu0 0.0
    %140 = vmatprep.subr.mxu0 0.0
    %141 = vmatpush1.msra.mxu0 0.0
    %142 = vmatprep.subr.mxu0 0.0
    %143 = vmatpush1.msra.mxu0 0.0
    %144 = vmatprep.subr.mxu0 0.0
    %145 = vmatpush1.msra.mxu0 0.0
    %146 = vmatprep.subr.mxu0 0.0
    %147 = vmatpush1.msra.mxu0 0.0
    %148 = vmatprep.subr.mxu0 0.0
    %149 = vmatpush1.msra.mxu0 0.0
    %150 = vmatprep.subr.mxu0 0.0
    %151 = vmatpush1.msra.mxu0 0.0
    %152 = vmatprep.subr.mxu0 0.0
    %153 = vmatpush1.msra.mxu0 0.0
    %154 = vmatprep.mubr.f32.mxu0 0.0
    %155 = vmatmul.mubr.f32.gmra.mrb[0].mxu0 %v76
    %v156 = vpop.f32.mrb[0].mxu0
    %v157 = vadd.f32 0.0, %v156
    %v158 = vpop.f32.mrb[0].mxu0
    %159 = vmatprep.mubr.f32.mxu0 0.0
    %160 = vmatmul.mubr.f32.gmra.mrb[0].mxu0 %v79
    %v161 = vpop.f32.mrb[0].mxu0
    %v162 = vadd.f32 0.0, %v161
    %v163 = vpop.f32.mrb[0].mxu0
    %164 = vmatprep.mubr.f32.mxu0 0.0
    %165 = vmatmul.mubr.f32.gmra.mrb[0].mxu0 %v82
    %v166 = vpop.f32.mrb[0].mxu0
    %v167 = vadd.f32 0.0, %v166
    %v168 = vpop.f32.mrb[0].mxu0
    %169 = vmatprep.mubr.f32.mxu0 0.0
    %170 = vmatmul.mubr.f32.gmra.mrb[0].mxu0 %v85
    %v171 = vpop.f32.mrb[0].mxu0
    %v172 = vadd.f32 0.0, %v171
    %v173 = vpop.f32.mrb[0].mxu0
    %174 = vmatprep.mubr.f32.mxu0 0.0
    %175 = vmatmul.mubr.f32.gmra.mrb[0].mxu0 %v88
    %v176 = vpop.f32.mrb[0].mxu0
    %v177 = vadd.f32 0.0, %v176
    %v178 = vpop.f32.mrb[0].mxu0
    %179 = vdwg.mxu0
    %v181 = vsel %vm34, %v56, 0
    %v184 = vsel %vm34, %v58, 0
    %v187 = vsel %vm34, %v60, 0
    %v190 = vsel %vm34, %v62, 0
    %v193 = vsel %vm34, %v64, 0
    %195 = vmatprep.subr.mxu0 0.0
    %196 = vmatpush1.msra.mxu0 %v52
    %197 = vmatprep.subr.mxu0 0.0
    %198 = vmatpush1.msra.mxu0 0.0
    %199 = vmatprep.subr.mxu0 0.0
    %200 = vmatpush1.msra.mxu0 0.0
    %201 = vmatprep.subr.mxu0 0.0
    %202 = vmatpush1.msra.mxu0 0.0
    %203 = vmatprep.subr.mxu0 0.0
    %204 = vmatpush1.msra.mxu0 0.0
    %205 = vmatprep.subr.mxu0 0.0
    %206 = vmatpush1.msra.mxu0 0.0
    %207 = vmatprep.subr.mxu0 0.0
    %208 = vmatpush1.msra.mxu0 0.0
    %209 = vmatprep.subr.mxu0 0.0
    %210 = vmatpush1.msra.mxu0 0.0
    %211 = vmatprep.subr.mxu0 0.0
    %212 = vmatpush1.msra.mxu0 0.0
    %213 = vmatprep.subr.mxu0 0.0
    %214 = vmatpush1.msra.mxu0 0.0
    %215 = vmatprep.subr.mxu0 0.0
    %216 = vmatpush1.msra.mxu0 0.0
    %217 = vmatprep.subr.mxu0 0.0
    %218 = vmatpush1.msra.mxu0 0.0
    %219 = vmatprep.subr.mxu0 0.0
    %220 = vmatpush1.msra.mxu0 0.0
    %221 = vmatprep.subr.mxu0 0.0
    %222 = vmatpush1.msra.mxu0 0.0
    %223 = vmatprep.subr.mxu0 0.0
    %224 = vmatpush1.msra.mxu0 0.0
    %225 = vmatprep.subr.mxu0 0.0
    %226 = vmatpush1.msra.mxu0 0.0
    %227 = vmatprep.subr.mxu0 0.0
    %228 = vmatpush1.msra.mxu0 0.0
    %229 = vmatprep.subr.mxu0 0.0
    %230 = vmatpush1.msra.mxu0 0.0
    %231 = vmatprep.subr.mxu0 0.0
    %232 = vmatpush1.msra.mxu0 0.0
    %233 = vmatprep.subr.mxu0 0.0
    %234 = vmatpush1.msra.mxu0 0.0
    %235 = vmatprep.subr.mxu0 0.0
    %236 = vmatpush1.msra.mxu0 0.0
    %237 = vmatprep.subr.mxu0 0.0
    %238 = vmatpush1.msra.mxu0 0.0
    %239 = vmatprep.subr.mxu0 0.0
    %240 = vmatpush1.msra.mxu0 0.0
    %241 = vmatprep.subr.mxu0 0.0
    %242 = vmatpush1.msra.mxu0 0.0
    %243 = vmatprep.subr.mxu0 0.0
    %244 = vmatpush1.msra.mxu0 0.0
    %245 = vmatprep.subr.mxu0 0.0
    %246 = vmatpush1.msra.mxu0 0.0
    %247 = vmatprep.subr.mxu0 0.0
    %248 = vmatpush1.msra.mxu0 0.0
    %249 = vmatprep.subr.mxu0 0.0
    %250 = vmatpush1.msra.mxu0 0.0
    %251 = vmatprep.subr.mxu0 0.0
    %252 = vmatpush1.msra.mxu0 0.0
    %253 = vmatprep.subr.mxu0 0.0
    %254 = vmatpush1.msra.mxu0 0.0
    %255 = vmatprep.subr.mxu0 0.0
    %256 = vmatpush1.msra.mxu0 0.0
    %257 = vmatprep.subr.mxu0 0.0
    %258 = vmatpush1.msra.mxu0 0.0
    %259 = vmatprep.mubr.f32.mxu0 0.0
    %260 = vmatmul.mubr.f32.gmra.mrb[0].mxu0 %v181
    %v261 = vpop.f32.mrb[0].mxu0
    %v262 = vadd.f32 %v157, %v261
    %v263 = vpop.f32.mrb[0].mxu0
    %264 = vmatprep.mubr.f32.mxu0 0.0
    %265 = vmatmul.mubr.f32.gmra.mrb[0].mxu0 %v184
    %v266 = vpop.f32.mrb[0].mxu0
    %v267 = vadd.f32 %v162, %v266
    %v268 = vpop.f32.mrb[0].mxu0
    %269 = vmatprep.mubr.f32.mxu0 0.0
    %270 = vmatmul.mubr.f32.gmra.mrb[0].mxu0 %v187
    %v271 = vpop.f32.mrb[0].mxu0
    %v272 = vadd.f32 %v167, %v271
    %v273 = vpop.f32.mrb[0].mxu0
    %274 = vmatprep.mubr.f32.mxu0 0.0
    %275 = vmatmul.mubr.f32.gmra.mrb[0].mxu0 %v190
    %v276 = vpop.f32.mrb[0].mxu0
    %v277 = vadd.f32 %v172, %v276
    %v278 = vpop.f32.mrb[0].mxu0
    %279 = vmatprep.mubr.f32.mxu0 0.0
    %280 = vmatmul.mubr.f32.gmra.mrb[0].mxu0 %v193
    %v281 = vpop.f32.mrb[0].mxu0
    %v282 = vadd.f32 %v177, %v281
    %v283 = vpop.f32.mrb[0].mxu0
    %284 = vdwg.mxu0
    %s285 = scalar_lea.vmem [#allocation2], 2
    %v286 = vld [vmem:[%s285] ss:$2 sm:$0xff]
    %s287 = scalar_lea.vmem [#allocation2], 18
    %v288 = vld [vmem:[%s287] ss:$2 sm:$0xff]
    %s289 = scalar_lea.vmem [#allocation2], 34
    %v290 = vld [vmem:[%s289] ss:$2 sm:$0xff]
    %s291 = scalar_lea.vmem [#allocation2], 50
    %v292 = vld [vmem:[%s291] ss:$2 sm:$0xff]
    %s293 = scalar_lea.vmem [#allocation2], 66
    %v294 = vld [vmem:[%s293] ss:$2 sm:$0x3]
    %v296 = vsel %vm34, %v286, 0
    %v299 = vsel %vm34, %v288, 0
    %v302 = vsel %vm34, %v290, 0
    %v305 = vsel %vm34, %v292, 0
    %v308 = vsel %vm34, %v294, 0
    %310 = vmatprep.subr.mxu0 0.0
    %311 = vmatpush1.msra.mxu0 %v54
    %312 = vmatprep.subr.mxu0 0.0
    %313 = vmatpush1.msra.mxu0 0.0
    %314 = vmatprep.subr.mxu0 0.0
    %315 = vmatpush1.msra.mxu0 0.0
    %316 = vmatprep.subr.mxu0 0.0
    %317 = vmatpush1.msra.mxu0 0.0
    %318 = vmatprep.subr.mxu0 0.0
    %319 = vmatpush1.msra.mxu0 0.0
    %320 = vmatprep.subr.mxu0 0.0
    %321 = vmatpush1.msra.mxu0 0.0
    %322 = vmatprep.subr.mxu0 0.0
    %323 = vmatpush1.msra.mxu0 0.0
    %324 = vmatprep.subr.mxu0 0.0
    %325 = vmatpush1.msra.mxu0 0.0
    %326 = vmatprep.subr.mxu0 0.0
    %327 = vmatpush1.msra.mxu0 0.0
    %328 = vmatprep.subr.mxu0 0.0
    %329 = vmatpush1.msra.mxu0 0.0
    %330 = vmatprep.subr.mxu0 0.0
    %331 = vmatpush1.msra.mxu0 0.0
    %332 = vmatprep.subr.mxu0 0.0
    %333 = vmatpush1.msra.mxu0 0.0
    %334 = vmatprep.subr.mxu0 0.0
    %335 = vmatpush1.msra.mxu0 0.0
    %336 = vmatprep.subr.mxu0 0.0
    %337 = vmatpush1.msra.mxu0 0.0
    %338 = vmatprep.subr.mxu0 0.0
    %339 = vmatpush1.msra.mxu0 0.0
    %340 = vmatprep.subr.mxu0 0.0
    %341 = vmatpush1.msra.mxu0 0.0
    %342 = vmatprep.subr.mxu0 0.0
    %343 = vmatpush1.msra.mxu0 0.0
    %344 = vmatprep.subr.mxu0 0.0
    %345 = vmatpush1.msra.mxu0 0.0
    %346 = vmatprep.subr.mxu0 0.0
    %347 = vmatpush1.msra.mxu0 0.0
    %348 = vmatprep.subr.mxu0 0.0
    %349 = vmatpush1.msra.mxu0 0.0
    %350 = vmatprep.subr.mxu0 0.0
    %351 = vmatpush1.msra.mxu0 0.0
    %352 = vmatprep.subr.mxu0 0.0
    %353 = vmatpush1.msra.mxu0 0.0
    %354 = vmatprep.subr.mxu0 0.0
    %355 = vmatpush1.msra.mxu0 0.0
    %356 = vmatprep.subr.mxu0 0.0
    %357 = vmatpush1.msra.mxu0 0.0
    %358 = vmatprep.subr.mxu0 0.0
    %359 = vmatpush1.msra.mxu0 0.0
    %360 = vmatprep.subr.mxu0 0.0
    %361 = vmatpush1.msra.mxu0 0.0
    %362 = vmatprep.subr.mxu0 0.0
    %363 = vmatpush1.msra.mxu0 0.0
    %364 = vmatprep.subr.mxu0 0.0
    %365 = vmatpush1.msra.mxu0 0.0
    %366 = vmatprep.subr.mxu0 0.0
    %367 = vmatpush1.msra.mxu0 0.0
    %368 = vmatprep.subr.mxu0 0.0
    %369 = vmatpush1.msra.mxu0 0.0
    %370 = vmatprep.subr.mxu0 0.0
    %371 = vmatpush1.msra.mxu0 0.0
    %372 = vmatprep.subr.mxu0 0.0
    %373 = vmatpush1.msra.mxu0 0.0
    %374 = vmatprep.mubr.f32.mxu0 0.0
    %375 = vmatmul.mubr.f32.gmra.mrb[0].mxu0 %v296
    %v376 = vpop.f32.mrb[0].mxu0
    %v377 = vadd.f32 0.0, %v376
    %v378 = vpop.f32.mrb[0].mxu0
    %379 = vmatprep.mubr.f32.mxu0 0.0
    %380 = vmatmul.mubr.f32.gmra.mrb[0].mxu0 %v299
    %v381 = vpop.f32.mrb[0].mxu0
    %v382 = vadd.f32 0.0, %v381
    %v383 = vpop.f32.mrb[0].mxu0
    %384 = vmatprep.mubr.f32.mxu0 0.0
    %385 = vmatmul.mubr.f32.gmra.mrb[0].mxu0 %v302
    %v386 = vpop.f32.mrb[0].mxu0
    %v387 = vadd.f32 0.0, %v386
    %v388 = vpop.f32.mrb[0].mxu0
    %389 = vmatprep.mubr.f32.mxu0 0.0
    %390 = vmatmul.mubr.f32.gmra.mrb[0].mxu0 %v305
    %v391 = vpop.f32.mrb[0].mxu0
    %v392 = vadd.f32 0.0, %v391
    %v393 = vpop.f32.mrb[0].mxu0
    %394 = vmatprep.mubr.f32.mxu0 0.0
    %395 = vmatmul.mubr.f32.gmra.mrb[0].mxu0 %v308
    %v396 = vpop.f32.mrb[0].mxu0
    %v397 = vadd.f32 0.0, %v396
    %v398 = vpop.f32.mrb[0].mxu0
    %399 = vdwg.mxu0
    %v400 = vadd.f32 %v262, %v377
    %v401 = vadd.f32 %v267, %v382
    %v402 = vadd.f32 %v272, %v387
    %v403 = vadd.f32 %v277, %v392
    %v404 = vadd.f32 %v282, %v397
    %s405 = scalar_lea.vmem [#allocation2], 3
    %v406 = vld [vmem:[%s405] ss:$2 sm:$0xff]
    %s407 = scalar_lea.vmem [#allocation2], 19
    %v408 = vld [vmem:[%s407] ss:$2 sm:$0xff]
    %s409 = scalar_lea.vmem [#allocation2], 35
    %v410 = vld [vmem:[%s409] ss:$2 sm:$0xff]
    %s411 = scalar_lea.vmem [#allocation2], 51
    %v412 = vld [vmem:[%s411] ss:$2 sm:$0xff]
    %s413 = scalar_lea.vmem [#allocation2], 67
    %v414 = vld [vmem:[%s413] ss:$2 sm:$0x3]
    %v416 = vsel %vm34, %v406, 0
    %v419 = vsel %vm34, %v408, 0
    %v422 = vsel %vm34, %v410, 0
    %v425 = vsel %vm34, %v412, 0
    %v428 = vsel %vm34, %v414, 0
    %430 = vmatprep.subr.mxu0 0.0
    %431 = vmatpush1.msra.mxu0 %v55
    %432 = vmatprep.subr.mxu0 0.0
    %433 = vmatpush1.msra.mxu0 0.0
    %434 = vmatprep.subr.mxu0 0.0
    %435 = vmatpush1.msra.mxu0 0.0
    %436 = vmatprep.subr.mxu0 0.0
    %437 = vmatpush1.msra.mxu0 0.0
    %438 = vmatprep.subr.mxu0 0.0
    %439 = vmatpush1.msra.mxu0 0.0
    %440 = vmatprep.subr.mxu0 0.0
    %441 = vmatpush1.msra.mxu0 0.0
    %442 = vmatprep.subr.mxu0 0.0
    %443 = vmatpush1.msra.mxu0 0.0
    %444 = vmatprep.subr.mxu0 0.0
    %445 = vmatpush1.msra.mxu0 0.0
    %446 = vmatprep.subr.mxu0 0.0
    %447 = vmatpush1.msra.mxu0 0.0
    %448 = vmatprep.subr.mxu0 0.0
    %449 = vmatpush1.msra.mxu0 0.0
    %450 = vmatprep.subr.mxu0 0.0
    %451 = vmatpush1.msra.mxu0 0.0
    %452 = vmatprep.subr.mxu0 0.0
    %453 = vmatpush1.msra.mxu0 0.0
    %454 = vmatprep.subr.mxu0 0.0
    %455 = vmatpush1.msra.mxu0 0.0
    %456 = vmatprep.subr.mxu0 0.0
    %457 = vmatpush1.msra.mxu0 0.0
    %458 = vmatprep.subr.mxu0 0.0
    %459 = vmatpush1.msra.mxu0 0.0
    %460 = vmatprep.subr.mxu0 0.0
    %461 = vmatpush1.msra.mxu0 0.0
    %462 = vmatprep.subr.mxu0 0.0
    %463 = vmatpush1.msra.mxu0 0.0
    %464 = vmatprep.subr.mxu0 0.0
    %465 = vmatpush1.msra.mxu0 0.0
    %466 = vmatprep.subr.mxu0 0.0
    %467 = vmatpush1.msra.mxu0 0.0
    %468 = vmatprep.subr.mxu0 0.0
    %469 = vmatpush1.msra.mxu0 0.0
    %470 = vmatprep.subr.mxu0 0.0
    %471 = vmatpush1.msra.mxu0 0.0
    %472 = vmatprep.subr.mxu0 0.0
    %473 = vmatpush1.msra.mxu0 0.0
    %474 = vmatprep.subr.mxu0 0.0
    %475 = vmatpush1.msra.mxu0 0.0
    %476 = vmatprep.subr.mxu0 0.0
    %477 = vmatpush1.msra.mxu0 0.0
    %478 = vmatprep.subr.mxu0 0.0
    %479 = vmatpush1.msra.mxu0 0.0
    %480 = vmatprep.subr.mxu0 0.0
    %481 = vmatpush1.msra.mxu0 0.0
    %482 = vmatprep.subr.mxu0 0.0
    %483 = vmatpush1.msra.mxu0 0.0
    %484 = vmatprep.subr.mxu0 0.0
    %485 = vmatpush1.msra.mxu0 0.0
    %486 = vmatprep.subr.mxu0 0.0
    %487 = vmatpush1.msra.mxu0 0.0
    %488 = vmatprep.subr.mxu0 0.0
    %489 = vmatpush1.msra.mxu0 0.0
    %490 = vmatprep.subr.mxu0 0.0
    %491 = vmatpush1.msra.mxu0 0.0
    %492 = vmatprep.subr.mxu0 0.0
    %493 = vmatpush1.msra.mxu0 0.0
    %494 = vmatprep.mubr.f32.mxu0 0.0
    %495 = vmatmul.mubr.f32.gmra.mrb[0].mxu0 %v416
    %v496 = vpop.f32.mrb[0].mxu0
    %v497 = vadd.f32 0.0, %v496
    %v498 = vpop.f32.mrb[0].mxu0
    %499 = vmatprep.mubr.f32.mxu0 0.0
    %500 = vmatmul.mubr.f32.gmra.mrb[0].mxu0 %v419
    %v501 = vpop.f32.mrb[0].mxu0
    %v502 = vadd.f32 0.0, %v501
    %v503 = vpop.f32.mrb[0].mxu0
    %504 = vmatprep.mubr.f32.mxu0 0.0
    %505 = vmatmul.mubr.f32.gmra.mrb[0].mxu0 %v422
    %v506 = vpop.f32.mrb[0].mxu0
    %v507 = vadd.f32 0.0, %v506
    %v508 = vpop.f32.mrb[0].mxu0
    %509 = vmatprep.mubr.f32.mxu0 0.0
    %510 = vmatmul.mubr.f32.gmra.mrb[0].mxu0 %v425
    %v511 = vpop.f32.mrb[0].mxu0
    %v512 = vadd.f32 0.0, %v511
    %v513 = vpop.f32.mrb[0].mxu0
    %514 = vmatprep.mubr.f32.mxu0 0.0
    %515 = vmatmul.mubr.f32.gmra.mrb[0].mxu0 %v428
    %v516 = vpop.f32.mrb[0].mxu0
    %v517 = vadd.f32 0.0, %v516
    %v518 = vpop.f32.mrb[0].mxu0
    %519 = vdwg.mxu0
    %v520 = vadd.f32 %v400, %v497
    %v521 = vadd.f32 %v401, %v502
    %v522 = vadd.f32 %v402, %v507
    %v523 = vadd.f32 %v403, %v512
    %v524 = vadd.f32 %v404, %v517
    %v525 = vlaneseq
    %v526 = vshrl.u32 %v525, 7
    %v527 = vsub.s32 0, %v526
    %v528 = vrot.slane %v18, %v527
    %v529 = vadd.f32 %v520, %v528
    %v530 = vadd.f32 %v521, %v528
    %v531 = vadd.f32 %v522, %v528
    %v532 = vadd.f32 %v523, %v528
    %v533 = vadd.f32 %v524, %v528
    %535 = vset.pattern.permute.xlu0 0
    %536 = vperm.xlu0 %535, %v20
    %v537 = vpop.permute.xlu0 %536
    %540 = vset.pattern.permute.xlu0 0
    %541 = vperm.xlu0 %540, %v21
    %v542 = vpop.permute.xlu0 %541
    %545 = vset.pattern.permute.xlu0 0
    %546 = vperm.xlu0 %545, %v22
    %v547 = vpop.permute.xlu0 %546
    %550 = vset.pattern.permute.xlu0 0
    %551 = vperm.xlu0 %550, %v23
    %v552 = vpop.permute.xlu0 %551
    %555 = vset.pattern.permute.xlu0 0
    %556 = vperm.xlu0 %555, %v24
    %v557 = vpop.permute.xlu0 %556
    %v559 = vmul.f32 %v529, %v537
    %v560 = vmul.f32 %v530, %v542
    %v561 = vmul.f32 %v531, %v547
    %v562 = vmul.f32 %v532, %v552
    %v563 = vmul.f32 %v533, %v557
    %vm564 = vcmask 261120
    %v565 = vsel %vm564, %v559, 0.0
    %v566 = vsel %vm564, %v560, 0.0
    %v567 = vadd.f32 %v565, %v566
    %v568 = vsel %vm564, %v561, 0.0
    %v569 = vadd.f32 %v567, %v568
    %v570 = vsel %vm564, %v562, 0.0
    %v571 = vadd.f32 %v569, %v570
    %vm572 = vcmask 254976
    %v573 = vsel %vm572, %v563, 0.0
    %v574 = vadd.f32 %v571, %v573
    %v575 = vrot.slane %v574, 4
    %v576 = vadd.f32 %v574, %v575
    %v577 = vrot.slane %v576, 2
    %v578 = vadd.f32 %v576, %v577
    %v579 = vrot.slane %v578, 1
    %v580 = vadd.f32 %v578, %v579
    %v581 = vmul.f32 %v580, 0.03125
    %v582 = vmul.f32 %v559, %v559
    %v583 = vmul.f32 %v560, %v560
    %v584 = vmul.f32 %v561, %v561
    %v585 = vmul.f32 %v562, %v562
    %v586 = vmul.f32 %v563, %v563
    %v587 = vsel %vm564, %v582, 0.0
    %v588 = vsel %vm564, %v583, 0.0
    %v589 = vadd.f32 %v587, %v588
    %v590 = vsel %vm564, %v584, 0.0
    %v591 = vadd.f32 %v589, %v590
    %v592 = vsel %vm564, %v585, 0.0
    %v593 = vadd.f32 %v591, %v592
    %v594 = vsel %vm572, %v586, 0.0
    %v595 = vadd.f32 %v593, %v594
    %v596 = vrot.slane %v595, 4
    %v597 = vadd.f32 %v595, %v596
    %v598 = vrot.slane %v597, 2
    %v599 = vadd.f32 %v597, %v598
    %v600 = vrot.slane %v599, 1
    %v601 = vadd.f32 %v599, %v600
    %v602 = vmul.f32 %v601, 0.03125
    %v603 = vmul.f32 %v581, %v581
    %v604 = vsub.f32 %v602, %v603
    %v605 = vadd.f32 %v604, 1e-05
    %v606 = vrsqrt.pop %v605
    %v607 = vmul.f32 %v18, %v606
    %v608 = vmul.f32 %v581, %v607
    %v610 = vrot.slane %v608, 7
    %v612 = vsub.f32 %v18, %v610
    %v613 = vlaneseq
    %v614 = vshrl.u32 %v613, 7
    %v615 = vsub.s32 1, %v614
    %v616 = vrot.slane %v607, %v615
    %v617 = vmul.f32 %v529, %v616
    %v618 = vmul.f32 %v530, %v616
    %v619 = vmul.f32 %v531, %v616
    %v620 = vmul.f32 %v532, %v616
    %v621 = vmul.f32 %v533, %v616
    %v622 = vlaneseq
    %v623 = vshrl.u32 %v622, 7
    %v624 = vsub.s32 2, %v623
    %v625 = vrot.slane %v612, %v624
    %v626 = vadd.f32 %v617, %v625
    %v627 = vadd.f32 %v618, %v625
    %v628 = vadd.f32 %v619, %v625
    %v629 = vadd.f32 %v620, %v625
    %v630 = vadd.f32 %v621, %v625
    %v631 = vsub.f32 0.0, %v626
    %v632 = vsub.f32 0.0, %v627
    %v633 = vsub.f32 0.0, %v628
    %v634 = vsub.f32 0.0, %v629
    %v635 = vsub.f32 0.0, %v630
    %v636 = vmul.f32 %v631, 1.442695
    %v637 = vpow.pop %v636
    %v638 = vmul.f32 %v632, 1.442695
    %v639 = vpow.pop %v638
    %v640 = vmul.f32 %v633, 1.442695
    %v641 = vpow.pop %v640
    %v642 = vmul.f32 %v634, 1.442695
    %v643 = vpow.pop %v642
    %v644 = vmul.f32 %v635, 1.442695
    %v645 = vpow.pop %v644
    %v646 = vadd.f32 %v637, 1.0
    %v647 = vadd.f32 %v639, 1.0
    %v648 = vadd.f32 %v641, 1.0
    %v649 = vadd.f32 %v643, 1.0
    %v650 = vadd.f32 %v645, 1.0
    %v651 = vrcp.pop %v646
    %v652 = vrcp.pop %v647
    %v653 = vrcp.pop %v648
    %v654 = vrcp.pop %v649
    %v655 = vrcp.pop %v650
    %661 = vrot.lane.b32.xlu0 %v651, 112
    %v662 = vpop.permute.xlu0 %661
    %663 = vrot.lane.b32.xlu0 %v652, 112
    %v664 = vpop.permute.xlu0 %663
    %665 = vrot.lane.b32.xlu0 %v653, 112
    %v666 = vpop.permute.xlu0 %665
    %667 = vrot.lane.b32.xlu0 %v654, 112
    %v668 = vpop.permute.xlu0 %667
    %669 = vrot.lane.b32.xlu0 %v655, 112
    %v670 = vpop.permute.xlu0 %669
    %v676 = vmul.f32 %v626, %v662
    %v677 = vmul.f32 %v627, %v664
    %v678 = vmul.f32 %v628, %v666
    %v679 = vmul.f32 %v629, %v668
    %v680 = vmul.f32 %v630, %v670
    %vm681 = vcmask 122880
    %682 = vst.msk [vmem:[#allocation3] sm:$0x1] %vm681, 0.0
    %vm683 = vcmask 130048
    %684 = vst.msk [vmem:[#allocation3 + $0x1] sm:$0xff] %vm683, %v676
    %685 = vst.msk [vmem:[#allocation3 + $0x9] sm:$0xff] %vm683, %v677
    %686 = vst.msk [vmem:[#allocation3 + $0x11] sm:$0x1] %vm681, 0.0
    %687 = vst.msk [vmem:[#allocation3 + $0x12] sm:$0x1] %vm681, 0.0
    %vm688 = vcmask 130049
    %689 = vst.msk [vmem:[#allocation3 + $0x12] sm:$0xfe] %vm688, %v678
    %690 = vst.msk [vmem:[#allocation3 + $0x1a] sm:$0xff] %vm683, %v679
    %691 = vst.msk [vmem:[#allocation3 + $0x22] sm:$0x1] %vm681, %v680
    %692 = vst.msk [vmem:[#allocation3 + $0x23] sm:$0x1] %vm681, 0.0
    %vm693 = vcmask 123904
    %694 = vst.msk [vmem:[#allocation3 + $0x24] sm:$0x3] %vm693, 0.0
    %v695 = vld [vmem:[%s1 + $0x20] sm:$0xff]
    %v696 = vld [vmem:[%s1 + $0x28] sm:$0xff]
    %v697 = vld [vmem:[%s1 + $0x30] sm:$0xff]
    %v698 = vld [vmem:[%s1 + $0x38] sm:$0xff]
    %v699 = vld [vmem:[%s1 + $0x40] sm:$0xff]
    %v700 = vld [vmem:[%s1 + $0x48] sm:$0xff]
    %v701 = vld [vmem:[%s1 + $0x50] sm:$0xff]
    %v702 = vld [vmem:[%s1 + $0x58] sm:$0xff]
    %v703 = vld [vmem:[#allocation3] ss:$2 sm:$0xff]
    %s704 = scalar_lea.vmem [#allocation3], 16
    %v705 = vld [vmem:[%s704] ss:$2 sm:$0xff]
    %s706 = scalar_lea.vmem [#allocation3], 32
    %v707 = vld [vmem:[%s706] ss:$2 sm:$0x3]
    %s708 = scalar_lea.vmem [#allocation3], 1
    %v709 = vld [vmem:[%s708] ss:$2 sm:$0xff]
    %s710 = scalar_lea.vmem [#allocation3], 17
    %v711 = vld [vmem:[%s710] ss:$2 sm:$0xff]
    %s712 = scalar_lea.vmem [#allocation3], 33
    %v713 = vld [vmem:[%s712] ss:$2 sm:$0x3]
    %v715 = vsel %vm683, %v709, 0
    %v718 = vsel %vm683, %v711, 0
    %v721 = vsel %vm683, %v713, 0
    %723 = vmatprep.subr.mxu0 0.0
    %724 = vmatpush1.msra.mxu0 %v697
    %725 = vmatprep.subr.mxu0 0.0
    %726 = vmatpush1.msra.mxu0 %v698
    %727 = vmatprep.subr.mxu0 0.0
    %728 = vmatpush1.msra.mxu0 0.0
    %729 = vmatprep.subr.mxu0 0.0
    %730 = vmatpush1.msra.mxu0 0.0
    %731 = vmatprep.subr.mxu0 0.0
    %732 = vmatpush1.msra.mxu0 0.0
    %733 = vmatprep.subr.mxu0 0.0
    %734 = vmatpush1.msra.mxu0 0.0
    %735 = vmatprep.subr.mxu0 0.0
    %736 = vmatpush1.msra.mxu0 0.0
    %737 = vmatprep.subr.mxu0 0.0
    %738 = vmatpush1.msra.mxu0 0.0
    %739 = vmatprep.subr.mxu0 0.0
    %740 = vmatpush1.msra.mxu0 0.0
    %741 = vmatprep.subr.mxu0 0.0
    %742 = vmatpush1.msra.mxu0 0.0
    %743 = vmatprep.subr.mxu0 0.0
    %744 = vmatpush1.msra.mxu0 0.0
    %745 = vmatprep.subr.mxu0 0.0
    %746 = vmatpush1.msra.mxu0 0.0
    %747 = vmatprep.subr.mxu0 0.0
    %748 = vmatpush1.msra.mxu0 0.0
    %749 = vmatprep.subr.mxu0 0.0
    %750 = vmatpush1.msra.mxu0 0.0
    %751 = vmatprep.subr.mxu0 0.0
    %752 = vmatpush1.msra.mxu0 0.0
    %753 = vmatprep.subr.mxu0 0.0
    %754 = vmatpush1.msra.mxu0 0.0
    %755 = vmatprep.subr.mxu0 0.0
    %756 = vmatpush1.msra.mxu0 0.0
    %757 = vmatprep.subr.mxu0 0.0
    %758 = vmatpush1.msra.mxu0 0.0
    %759 = vmatprep.subr.mxu0 0.0
    %760 = vmatpush1.msra.mxu0 0.0
    %761 = vmatprep.subr.mxu0 0.0
    %762 = vmatpush1.msra.mxu0 0.0
    %763 = vmatprep.subr.mxu0 0.0
    %764 = vmatpush1.msra.mxu0 0.0
    %765 = vmatprep.subr.mxu0 0.0
    %766 = vmatpush1.msra.mxu0 0.0
    %767 = vmatprep.subr.mxu0 0.0
    %768 = vmatpush1.msra.mxu0 0.0
    %769 = vmatprep.subr.mxu0 0.0
    %770 = vmatpush1.msra.mxu0 0.0
    %771 = vmatprep.subr.mxu0 0.0
    %772 = vmatpush1.msra.mxu0 0.0
    %773 = vmatprep.subr.mxu0 0.0
    %774 = vmatpush1.msra.mxu0 0.0
    %775 = vmatprep.subr.mxu0 0.0
    %776 = vmatpush1.msra.mxu0 0.0
    %777 = vmatprep.subr.mxu0 0.0
    %778 = vmatpush1.msra.mxu0 0.0
    %779 = vmatprep.subr.mxu0 0.0
    %780 = vmatpush1.msra.mxu0 0.0
    %781 = vmatprep.subr.mxu0 0.0
    %782 = vmatpush1.msra.mxu0 0.0
    %783 = vmatprep.subr.mxu0 0.0
    %784 = vmatpush1.msra.mxu0 0.0
    %785 = vmatprep.subr.mxu0 0.0
    %786 = vmatpush1.msra.mxu0 0.0
    %787 = vmatprep.mubr.f32.mxu0 0.0
    %788 = vmatmul.mubr.f32.gmra.mrb[0].mxu0 %v715
    %v789 = vpop.f32.mrb[0].mxu0
    %v790 = vadd.f32 0.0, %v789
    %v791 = vpop.f32.mrb[0].mxu0
    %792 = vmatprep.mubr.f32.mxu0 0.0
    %793 = vmatmul.mubr.f32.gmra.mrb[0].mxu0 %v718
    %v794 = vpop.f32.mrb[0].mxu0
    %v795 = vadd.f32 0.0, %v794
    %v796 = vpop.f32.mrb[0].mxu0
    %797 = vmatprep.mubr.f32.mxu0 0.0
    %798 = vmatmul.mubr.f32.gmra.mrb[0].mxu0 %v721
    %v799 = vpop.f32.mrb[0].mxu0
    %v800 = vadd.f32 0.0, %v799
    %v801 = vpop.f32.mrb[0].mxu0
    %802 = vdwg.mxu0
    %v804 = vsel %vm683, %v703, 0
    %v807 = vsel %vm683, %v705, 0
    %v810 = vsel %vm683, %v707, 0
    %812 = vmatprep.subr.mxu0 0.0
    %813 = vmatpush1.msra.mxu0 %v695
    %814 = vmatprep.subr.mxu0 0.0
    %815 = vmatpush1.msra.mxu0 %v696
    %816 = vmatprep.subr.mxu0 0.0
    %817 = vmatpush1.msra.mxu0 0.0
    %818 = vmatprep.subr.mxu0 0.0
    %819 = vmatpush1.msra.mxu0 0.0
    %820 = vmatprep.subr.mxu0 0.0
    %821 = vmatpush1.msra.mxu0 0.0
    %822 = vmatprep.subr.mxu0 0.0
    %823 = vmatpush1.msra.mxu0 0.0
    %824 = vmatprep.subr.mxu0 0.0
    %825 = vmatpush1.msra.mxu0 0.0
    %826 = vmatprep.subr.mxu0 0.0
    %827 = vmatpush1.msra.mxu0 0.0
    %828 = vmatprep.subr.mxu0 0.0
    %829 = vmatpush1.msra.mxu0 0.0
    %830 = vmatprep.subr.mxu0 0.0
    %831 = vmatpush1.msra.mxu0 0.0
    %832 = vmatprep.subr.mxu0 0.0
    %833 = vmatpush1.msra.mxu0 0.0
    %834 = vmatprep.subr.mxu0 0.0
    %835 = vmatpush1.msra.mxu0 0.0
    %836 = vmatprep.subr.mxu0 0.0
    %837 = vmatpush1.msra.mxu0 0.0
    %838 = vmatprep.subr.mxu0 0.0
    %839 = vmatpush1.msra.mxu0 0.0
    %840 = vmatprep.subr.mxu0 0.0
    %841 = vmatpush1.msra.mxu0 0.0
    %842 = vmatprep.subr.mxu0 0.0
    %843 = vmatpush1.msra.mxu0 0.0
    %844 = vmatprep.subr.mxu0 0.0
    %845 = vmatpush1.msra.mxu0 0.0
    %846 = vmatprep.subr.mxu0 0.0
    %847 = vmatpush1.msra.mxu0 0.0
    %848 = vmatprep.subr.mxu0 0.0
    %849 = vmatpush1.msra.mxu0 0.0
    %850 = vmatprep.subr.mxu0 0.0
    %851 = vmatpush1.msra.mxu0 0.0
    %852 = vmatprep.subr.mxu0 0.0
    %853 = vmatpush1.msra.mxu0 0.0
    %854 = vmatprep.subr.mxu0 0.0
    %855 = vmatpush1.msra.mxu0 0.0
    %856 = vmatprep.subr.mxu0 0.0
    %857 = vmatpush1.msra.mxu0 0.0
    %858 = vmatprep.subr.mxu0 0.0
    %859 = vmatpush1.msra.mxu0 0.0
    %860 = vmatprep.subr.mxu0 0.0
    %861 = vmatpush1.msra.mxu0 0.0
    %862 = vmatprep.subr.mxu0 0.0
    %863 = vmatpush1.msra.mxu0 0.0
    %864 = vmatprep.subr.mxu0 0.0
    %865 = vmatpush1.msra.mxu0 0.0
    %866 = vmatprep.subr.mxu0 0.0
    %867 = vmatpush1.msra.mxu0 0.0
    %868 = vmatprep.subr.mxu0 0.0
    %869 = vmatpush1.msra.mxu0 0.0
    %870 = vmatprep.subr.mxu0 0.0
    %871 = vmatpush1.msra.mxu0 0.0
    %872 = vmatprep.subr.mxu0 0.0
    %873 = vmatpush1.msra.mxu0 0.0
    %874 = vmatprep.subr.mxu0 0.0
    %875 = vmatpush1.msra.mxu0 0.0
    %876 = vmatprep.mubr.f32.mxu0 0.0
    %877 = vmatmul.mubr.f32.gmra.mrb[0].mxu0 %v804
    %v878 = vpop.f32.mrb[0].mxu0
    %v879 = vadd.f32 %v790, %v878
    %v880 = vpop.f32.mrb[0].mxu0
    %881 = vmatprep.mubr.f32.mxu0 0.0
    %882 = vmatmul.mubr.f32.gmra.mrb[0].mxu0 %v807
    %v883 = vpop.f32.mrb[0].mxu0
    %v884 = vadd.f32 %v795, %v883
    %v885 = vpop.f32.mrb[0].mxu0
    %886 = vmatprep.mubr.f32.mxu0 0.0
    %887 = vmatmul.mubr.f32.gmra.mrb[0].mxu0 %v810
    %v888 = vpop.f32.mrb[0].mxu0
    %v889 = vadd.f32 %v800, %v888
    %v890 = vpop.f32.mrb[0].mxu0
    %891 = vdwg.mxu0
    %s892 = scalar_lea.vmem [#allocation3], 2
    %v893 = vld [vmem:[%s892] ss:$2 sm:$0xff]
    %s894 = scalar_lea.vmem [#allocation3], 18
    %v895 = vld [vmem:[%s894] ss:$2 sm:$0xff]
    %s896 = scalar_lea.vmem [#allocation3], 34
    %v897 = vld [vmem:[%s896] ss:$2 sm:$0x3]
    %v899 = vsel %vm683, %v893, 0
    %v902 = vsel %vm683, %v895, 0
    %v905 = vsel %vm683, %v897, 0
    %907 = vmatprep.subr.mxu0 0.0
    %908 = vmatpush1.msra.mxu0 %v699
    %909 = vmatprep.subr.mxu0 0.0
    %910 = vmatpush1.msra.mxu0 %v700
    %911 = vmatprep.subr.mxu0 0.0
    %912 = vmatpush1.msra.mxu0 0.0
    %913 = vmatprep.subr.mxu0 0.0
    %914 = vmatpush1.msra.mxu0 0.0
    %915 = vmatprep.subr.mxu0 0.0
    %916 = vmatpush1.msra.mxu0 0.0
    %917 = vmatprep.subr.mxu0 0.0
    %918 = vmatpush1.msra.mxu0 0.0
    %919 = vmatprep.subr.mxu0 0.0
    %920 = vmatpush1.msra.mxu0 0.0
    %921 = vmatprep.subr.mxu0 0.0
    %922 = vmatpush1.msra.mxu0 0.0
    %923 = vmatprep.subr.mxu0 0.0
    %924 = vmatpush1.msra.mxu0 0.0
    %925 = vmatprep.subr.mxu0 0.0
    %926 = vmatpush1.msra.mxu0 0.0
    %927 = vmatprep.subr.mxu0 0.0
    %928 = vmatpush1.msra.mxu0 0.0
    %929 = vmatprep.subr.mxu0 0.0
    %930 = vmatpush1.msra.mxu0 0.0
    %931 = vmatprep.subr.mxu0 0.0
    %932 = vmatpush1.msra.mxu0 0.0
    %933 = vmatprep.subr.mxu0 0.0
    %934 = vmatpush1.msra.mxu0 0.0
    %935 = vmatprep.subr.mxu0 0.0
    %936 = vmatpush1.msra.mxu0 0.0
    %937 = vmatprep.subr.mxu0 0.0
    %938 = vmatpush1.msra.mxu0 0.0
    %939 = vmatprep.subr.mxu0 0.0
    %940 = vmatpush1.msra.mxu0 0.0
    %941 = vmatprep.subr.mxu0 0.0
    %942 = vmatpush1.msra.mxu0 0.0
    %943 = vmatprep.subr.mxu0 0.0
    %944 = vmatpush1.msra.mxu0 0.0
    %945 = vmatprep.subr.mxu0 0.0
    %946 = vmatpush1.msra.mxu0 0.0
    %947 = vmatprep.subr.mxu0 0.0
    %948 = vmatpush1.msra.mxu0 0.0
    %949 = vmatprep.subr.mxu0 0.0
    %950 = vmatpush1.msra.mxu0 0.0
    %951 = vmatprep.subr.mxu0 0.0
    %952 = vmatpush1.msra.mxu0 0.0
    %953 = vmatprep.subr.mxu0 0.0
    %954 = vmatpush1.msra.mxu0 0.0
    %955 = vmatprep.subr.mxu0 0.0
    %956 = vmatpush1.msra.mxu0 0.0
    %957 = vmatprep.subr.mxu0 0.0
    %958 = vmatpush1.msra.mxu0 0.0
    %959 = vmatprep.subr.mxu0 0.0
    %960 = vmatpush1.msra.mxu0 0.0
    %961 = vmatprep.subr.mxu0 0.0
    %962 = vmatpush1.msra.mxu0 0.0
    %963 = vmatprep.subr.mxu0 0.0
    %964 = vmatpush1.msra.mxu0 0.0
    %965 = vmatprep.subr.mxu0 0.0
    %966 = vmatpush1.msra.mxu0 0.0
    %967 = vmatprep.subr.mxu0 0.0
    %968 = vmatpush1.msra.mxu0 0.0
    %969 = vmatprep.subr.mxu0 0.0
    %970 = vmatpush1.msra.mxu0 0.0
    %971 = vmatprep.mubr.f32.mxu0 0.0
    %972 = vmatmul.mubr.f32.gmra.mrb[0].mxu0 %v899
    %v973 = vpop.f32.mrb[0].mxu0
    %v974 = vadd.f32 0.0, %v973
    %v975 = vpop.f32.mrb[0].mxu0
    %976 = vmatprep.mubr.f32.mxu0 0.0
    %977 = vmatmul.mubr.f32.gmra.mrb[0].mxu0 %v902
    %v978 = vpop.f32.mrb[0].mxu0
    %v979 = vadd.f32 0.0, %v978
    %v980 = vpop.f32.mrb[0].mxu0
    %981 = vmatprep.mubr.f32.mxu0 0.0
    %982 = vmatmul.mubr.f32.gmra.mrb[0].mxu0 %v905
    %v983 = vpop.f32.mrb[0].mxu0
    %v984 = vadd.f32 0.0, %v983
    %v985 = vpop.f32.mrb[0].mxu0
    %986 = vdwg.mxu0
    %v987 = vadd.f32 %v879, %v974
    %v988 = vadd.f32 %v884, %v979
    %v989 = vadd.f32 %v889, %v984
    %s990 = scalar_lea.vmem [#allocation3], 3
    %v991 = vld [vmem:[%s990] ss:$2 sm:$0xff]
    %s992 = scalar_lea.vmem [#allocation3], 19
    %v993 = vld [vmem:[%s992] ss:$2 sm:$0xff]
    %s994 = scalar_lea.vmem [#allocation3], 35
    %v995 = vld [vmem:[%s994] ss:$2 sm:$0x3]
    %v997 = vsel %vm683, %v991, 0
    %v1000 = vsel %vm683, %v993, 0
    %v1003 = vsel %vm683, %v995, 0
    %1005 = vmatprep.subr.mxu0 0.0
    %1006 = vmatpush1.msra.mxu0 %v701
    %1007 = vmatprep.subr.mxu0 0.0
    %1008 = vmatpush1.msra.mxu0 %v702
    %1009 = vmatprep.subr.mxu0 0.0
    %1010 = vmatpush1.msra.mxu0 0.0
    %1011 = vmatprep.subr.mxu0 0.0
    %1012 = vmatpush1.msra.mxu0 0.0
    %1013 = vmatprep.subr.mxu0 0.0
    %1014 = vmatpush1.msra.mxu0 0.0
    %1015 = vmatprep.subr.mxu0 0.0
    %1016 = vmatpush1.msra.mxu0 0.0
    %1017 = vmatprep.subr.mxu0 0.0
    %1018 = vmatpush1.msra.mxu0 0.0
    %1019 = vmatprep.subr.mxu0 0.0
    %1020 = vmatpush1.msra.mxu0 0.0
    %1021 = vmatprep.subr.mxu0 0.0
    %1022 = vmatpush1.msra.mxu0 0.0
    %1023 = vmatprep.subr.mxu0 0.0
    %1024 = vmatpush1.msra.mxu0 0.0
    %1025 = vmatprep.subr.mxu0 0.0
    %1026 = vmatpush1.msra.mxu0 0.0
    %1027 = vmatprep.subr.mxu0 0.0
    %1028 = vmatpush1.msra.mxu0 0.0
    %1029 = vmatprep.subr.mxu0 0.0
    %1030 = vmatpush1.msra.mxu0 0.0
    %1031 = vmatprep.subr.mxu0 0.0
    %1032 = vmatpush1.msra.mxu0 0.0
    %1033 = vmatprep.subr.mxu0 0.0
    %1034 = vmatpush1.msra.mxu0 0.0
    %1035 = vmatprep.subr.mxu0 0.0
    %1036 = vmatpush1.msra.mxu0 0.0
    %1037 = vmatprep.subr.mxu0 0.0
    %1038 = vmatpush1.msra.mxu0 0.0
    %1039 = vmatprep.subr.mxu0 0.0
    %1040 = vmatpush1.msra.mxu0 0.0
    %1041 = vmatprep.subr.mxu0 0.0
    %1042 = vmatpush1.msra.mxu0 0.0
    %1043 = vmatprep.subr.mxu0 0.0
    %1044 = vmatpush1.msra.mxu0 0.0
    %1045 = vmatprep.subr.mxu0 0.0
    %1046 = vmatpush1.msra.mxu0 0.0
    %1047 = vmatprep.subr.mxu0 0.0
    %1048 = vmatpush1.msra.mxu0 0.0
    %1049 = vmatprep.subr.mxu0 0.0
    %1050 = vmatpush1.msra.mxu0 0.0
    %1051 = vmatprep.subr.mxu0 0.0
    %1052 = vmatpush1.msra.mxu0 0.0
    %1053 = vmatprep.subr.mxu0 0.0
    %1054 = vmatpush1.msra.mxu0 0.0
    %1055 = vmatprep.subr.mxu0 0.0
    %1056 = vmatpush1.msra.mxu0 0.0
    %1057 = vmatprep.subr.mxu0 0.0
    %1058 = vmatpush1.msra.mxu0 0.0
    %1059 = vmatprep.subr.mxu0 0.0
    %1060 = vmatpush1.msra.mxu0 0.0
    %1061 = vmatprep.subr.mxu0 0.0
    %1062 = vmatpush1.msra.mxu0 0.0
    %1063 = vmatprep.subr.mxu0 0.0
    %1064 = vmatpush1.msra.mxu0 0.0
    %1065 = vmatprep.subr.mxu0 0.0
    %1066 = vmatpush1.msra.mxu0 0.0
    %1067 = vmatprep.subr.mxu0 0.0
    %1068 = vmatpush1.msra.mxu0 0.0
    %1069 = vmatprep.mubr.f32.mxu0 0.0
    %1070 = vmatmul.mubr.f32.gmra.mrb[0].mxu0 %v997
    %v1071 = vpop.f32.mrb[0].mxu0
    %v1072 = vadd.f32 0.0, %v1071
    %v1073 = vpop.f32.mrb[0].mxu0
    %1074 = vmatprep.mubr.f32.mxu0 0.0
    %1075 = vmatmul.mubr.f32.gmra.mrb[0].mxu0 %v1000
    %v1076 = vpop.f32.mrb[0].mxu0
    %v1077 = vadd.f32 0.0, %v1076
    %v1078 = vpop.f32.mrb[0].mxu0
    %1079 = vmatprep.mubr.f32.mxu0 0.0
    %1080 = vmatmul.mubr.f32.gmra.mrb[0].mxu0 %v1003
    %v1081 = vpop.f32.mrb[0].mxu0
    %v1082 = vadd.f32 0.0, %v1081
    %v1083 = vpop.f32.mrb[0].mxu0
    %1084 = vdwg.mxu0
    %v1085 = vadd.f32 %v987, %v1072
    %v1086 = vadd.f32 %v988, %v1077
    %v1087 = vadd.f32 %v989, %v1082
    %v1088 = vlaneseq
    %v1089 = vshrl.u32 %v1088, 7
    %v1090 = vsub.s32 3, %v1089
    %v1091 = vrot.slane %v18, %v1090
    %v1092 = vadd.f32 %v1085, %v1091
    %v1093 = vadd.f32 %v1086, %v1091
    %v1094 = vadd.f32 %v1087, %v1091
    %1096 = vset.pattern.permute.xlu0 0
    %1097 = vperm.xlu0 %1096, %v25
    %v1098 = vpop.permute.xlu0 %1097
    %1100 = vset.pattern.permute.xlu0 0
    %1101 = vperm.xlu0 %1100, %v26
    %v1102 = vpop.permute.xlu0 %1101
    %vm1103 = vcmask 1045504
    %v1104 = vrot.slane %v557, 2
    %v1105 = vrot.slane %v1098, 2
    %v1106 = vsel %vm1103, %v1104, %v1105
    %v1107 = vrot.slane %v1102, 2
    %v1108 = vsel %vm1103, %v1105, %v1107
    %v1112 = vmul.f32 %v1092, %v1106
    %v1113 = vmul.f32 %v1093, %v1108
    %v1114 = vmul.f32 %v1094, %v1107
    %vm1115 = vcmask 523264
    %v1116 = vsel %vm1115, %v1112, 0.0
    %v1117 = vsel %vm1115, %v1113, 0.0
    %v1118 = vadd.f32 %v1116, %v1117
    %vm1119 = vcmask 517120
    %v1120 = vsel %vm1119, %v1114, 0.0
    %v1121 = vadd.f32 %v1118, %v1120
    %v1122 = vrot.slane %v1121, 4
    %v1123 = vadd.f32 %v1121, %v1122
    %v1124 = vrot.slane %v1123, 2
    %v1125 = vadd.f32 %v1123, %v1124
    %v1126 = vrot.slane %v1125, 1
    %v1127 = vadd.f32 %v1125, %v1126
    %v1128 = vmul.f32 %v1127, 0.0625
    %v1129 = vmul.f32 %v1112, %v1112
    %v1130 = vmul.f32 %v1113, %v1113
    %v1131 = vmul.f32 %v1114, %v1114
    %v1132 = vsel %vm1115, %v1129, 0.0
    %v1133 = vsel %vm1115, %v1130, 0.0
    %v1134 = vadd.f32 %v1132, %v1133
    %v1135 = vsel %vm1119, %v1131, 0.0
    %v1136 = vadd.f32 %v1134, %v1135
    %v1137 = vrot.slane %v1136, 4
    %v1138 = vadd.f32 %v1136, %v1137
    %v1139 = vrot.slane %v1138, 2
    %v1140 = vadd.f32 %v1138, %v1139
    %v1141 = vrot.slane %v1140, 1
    %v1142 = vadd.f32 %v1140, %v1141
    %v1143 = vmul.f32 %v1142, 0.0625
    %v1144 = vmul.f32 %v1128, %v1128
    %v1145 = vsub.f32 %v1143, %v1144
    %v1146 = vadd.f32 %v1145, 1e-05
    %v1147 = vrsqrt.pop %v1146
    %v1148 = vmul.f32 %v18, %v1147
    %v1149 = vmul.f32 %v1128, %v1148
    %v1151 = vrot.slane %v1149, 7
    %v1153 = vsub.f32 %v18, %v1151
    %v1154 = vlaneseq
    %v1155 = vshrl.u32 %v1154, 7
    %v1156 = vsub.s32 4, %v1155
    %v1157 = vrot.slane %v1148, %v1156
    %v1158 = vmul.f32 %v1092, %v1157
    %v1159 = vmul.f32 %v1093, %v1157
    %v1160 = vmul.f32 %v1094, %v1157
    %v1161 = vlaneseq
    %v1162 = vshrl.u32 %v1161, 7
    %v1163 = vsub.s32 5, %v1162
    %v1164 = vrot.slane %v1153, %v1163
    %v1165 = vadd.f32 %v1158, %v1164
    %v1166 = vadd.f32 %v1159, %v1164
    %v1167 = vadd.f32 %v1160, %v1164
    %v1168 = vsub.f32 0.0, %v1165
    %v1169 = vsub.f32 0.0, %v1166
    %v1170 = vsub.f32 0.0, %v1167
    %v1171 = vmul.f32 %v1168, 1.442695
    %v1172 = vpow.pop %v1171
    %v1173 = vmul.f32 %v1169, 1.442695
    %v1174 = vpow.pop %v1173
    %v1175 = vmul.f32 %v1170, 1.442695
    %v1176 = vpow.pop %v1175
    %v1177 = vadd.f32 %v1172, 1.0
    %v1178 = vadd.f32 %v1174, 1.0
    %v1179 = vadd.f32 %v1176, 1.0
    %v1180 = vrcp.pop %v1177
    %v1181 = vrcp.pop %v1178
    %v1182 = vrcp.pop %v1179
    %1186 = vrot.lane.b32.xlu0 %v1180, 96
    %v1187 = vpop.permute.xlu0 %1186
    %1188 = vrot.lane.b32.xlu0 %v1181, 96
    %v1189 = vpop.permute.xlu0 %1188
    %1190 = vrot.lane.b32.xlu0 %v1182, 96
    %v1191 = vpop.permute.xlu0 %1190
    %v1195 = vmul.f32 %v1165, %v1187
    %v1196 = vmul.f32 %v1166, %v1189
    %v1197 = vmul.f32 %v1167, %v1191
    %vm1198 = vcmask 253952
    %1199 = vst.msk [vmem:[#allocation4] sm:$0x1] %vm1198, 0.0
    %1200 = vst.msk [vmem:[#allocation4 + $0x1] sm:$0xff] %vm564, %v1195
    %1201 = vst.msk [vmem:[#allocation4 + $0x9] sm:$0x1] %vm1198, 0.0
    %1202 = vst.msk [vmem:[#allocation4 + $0xa] sm:$0x1] %vm1198, 0.0
    %vm1203 = vcmask 261121
    %1204 = vst.msk [vmem:[#allocation4 + $0xa] sm:$0xfe] %vm1203, %v1196
    %1205 = vst.msk [vmem:[#allocation4 + $0x12] sm:$0x1] %vm1198, %v1197
    %1206 = vst.msk [vmem:[#allocation4 + $0x13] sm:$0x1] %vm1198, 0.0
    %1207 = vst.msk [vmem:[#allocation4 + $0x14] sm:$0x3] %vm572, 0.0
    %v1208 = vld [vmem:[%s1 + $0x60] sm:$0xff]
    %v1209 = vld [vmem:[%s1 + $0x68] sm:$0xff]
    %v1210 = vld [vmem:[%s1 + $0x70] sm:$0xff]
    %v1211 = vld [vmem:[%s1 + $0x78] sm:$0xff]
    %v1212 = vld [vmem:[%s1 + $0x80] sm:$0xff]
    %v1213 = vld [vmem:[%s1 + $0x88] sm:$0xff]
    %v1214 = vld [vmem:[%s1 + $0x90] sm:$0xff]
    %v1215 = vld [vmem:[%s1 + $0x98] sm:$0xff]
    %v1216 = vld [vmem:[%s1 + $0xa0] sm:$0xff]
    %v1217 = vld [vmem:[%s1 + $0xa8] sm:$0xff]
    %v1218 = vld [vmem:[%s1 + $0xb0] sm:$0xff]
    %v1219 = vld [vmem:[%s1 + $0xb8] sm:$0xff]
    %v1220 = vld [vmem:[%s1 + $0xc0] sm:$0xff]
    %v1221 = vld [vmem:[%s1 + $0xc8] sm:$0xff]
    %v1222 = vld [vmem:[%s1 + $0xd0] sm:$0xff]
    %v1223 = vld [vmem:[%s1 + $0xd8] sm:$0xff]
    %v1224 = vld [vmem:[#allocation4] ss:$2 sm:$0xff]
    %s1225 = scalar_lea.vmem [#allocation4], 16
    %v1226 = vld [vmem:[%s1225] ss:$2 sm:$0x3]
    %s1227 = scalar_lea.vmem [#allocation4], 1
    %v1228 = vld [vmem:[%s1227] ss:$2 sm:$0xff]
    %s1229 = scalar_lea.vmem [#allocation4], 17
    %v1230 = vld [vmem:[%s1229] ss:$2 sm:$0x3]
    %v1232 = vsel %vm564, %v1228, 0
    %v1235 = vsel %vm564, %v1230, 0
    %1237 = vmatprep.subr.mxu0 0.0
    %1238 = vmatpush1.msra.mxu0 %v1212
    %1239 = vmatprep.subr.mxu0 0.0
    %1240 = vmatpush1.msra.mxu0 %v1213
    %1241 = vmatprep.subr.mxu0 0.0
    %1242 = vmatpush1.msra.mxu0 %v1214
    %1243 = vmatprep.subr.mxu0 0.0
    %1244 = vmatpush1.msra.mxu0 %v1215
    %1245 = vmatprep.subr.mxu0 0.0
    %1246 = vmatpush1.msra.mxu0 0.0
    %1247 = vmatprep.subr.mxu0 0.0
    %1248 = vmatpush1.msra.mxu0 0.0
    %1249 = vmatprep.subr.mxu0 0.0
    %1250 = vmatpush1.msra.mxu0 0.0
    %1251 = vmatprep.subr.mxu0 0.0
    %1252 = vmatpush1.msra.mxu0 0.0
    %1253 = vmatprep.subr.mxu0 0.0
    %1254 = vmatpush1.msra.mxu0 0.0
    %1255 = vmatprep.subr.mxu0 0.0
    %1256 = vmatpush1.msra.mxu0 0.0
    %1257 = vmatprep.subr.mxu0 0.0
    %1258 = vmatpush1.msra.mxu0 0.0
    %1259 = vmatprep.subr.mxu0 0.0
    %1260 = vmatpush1.msra.mxu0 0.0
    %1261 = vmatprep.subr.mxu0 0.0
    %1262 = vmatpush1.msra.mxu0 0.0
    %1263 = vmatprep.subr.mxu0 0.0
    %1264 = vmatpush1.msra.mxu0 0.0
    %1265 = vmatprep.subr.mxu0 0.0
    %1266 = vmatpush1.msra.mxu0 0.0
    %1267 = vmatprep.subr.mxu0 0.0
    %1268 = vmatpush1.msra.mxu0 0.0
    %1269 = vmatprep.subr.mxu0 0.0
    %1270 = vmatpush1.msra.mxu0 0.0
    %1271 = vmatprep.subr.mxu0 0.0
    %1272 = vmatpush1.msra.mxu0 0.0
    %1273 = vmatprep.subr.mxu0 0.0
    %1274 = vmatpush1.msra.mxu0 0.0
    %1275 = vmatprep.subr.mxu0 0.0
    %1276 = vmatpush1.msra.mxu0 0.0
    %1277 = vmatprep.subr.mxu0 0.0
    %1278 = vmatpush1.msra.mxu0 0.0
    %1279 = vmatprep.subr.mxu0 0.0
    %1280 = vmatpush1.msra.mxu0 0.0
    %1281 = vmatprep.subr.mxu0 0.0
    %1282 = vmatpush1.msra.mxu0 0.0
    %1283 = vmatprep.subr.mxu0 0.0
    %1284 = vmatpush1.msra.mxu0 0.0
    %1285 = vmatprep.subr.mxu0 0.0
    %1286 = vmatpush1.msra.mxu0 0.0
    %1287 = vmatprep.subr.mxu0 0.0
    %1288 = vmatpush1.msra.mxu0 0.0
    %1289 = vmatprep.subr.mxu0 0.0
    %1290 = vmatpush1.msra.mxu0 0.0
    %1291 = vmatprep.subr.mxu0 0.0
    %1292 = vmatpush1.msra.mxu0 0.0
    %1293 = vmatprep.subr.mxu0 0.0
    %1294 = vmatpush1.msra.mxu0 0.0
    %1295 = vmatprep.subr.mxu0 0.0
    %1296 = vmatpush1.msra.mxu0 0.0
    %1297 = vmatprep.subr.mxu0 0.0
    %1298 = vmatpush1.msra.mxu0 0.0
    %1299 = vmatprep.subr.mxu0 0.0
    %1300 = vmatpush1.msra.mxu0 0.0
    %1301 = vmatprep.mubr.f32.mxu0 0.0
    %1302 = vmatmul.mubr.f32.gmra.mrb[0].mxu0 %v1232
    %v1303 = vpop.f32.mrb[0].mxu0
    %v1304 = vadd.f32 0.0, %v1303
    %v1305 = vpop.f32.mrb[0].mxu0
    %1306 = vmatprep.mubr.f32.mxu0 0.0
    %1307 = vmatmul.mubr.f32.gmra.mrb[0].mxu0 %v1235
    %v1308 = vpop.f32.mrb[0].mxu0
    %v1309 = vadd.f32 0.0, %v1308
    %v1310 = vpop.f32.mrb[0].mxu0
    %1311 = vdwg.mxu0
    %v1313 = vsel %vm564, %v1224, 0
    %v1316 = vsel %vm564, %v1226, 0
    %1318 = vmatprep.subr.mxu0 0.0
    %1319 = vmatpush1.msra.mxu0 %v1208
    %1320 = vmatprep.subr.mxu0 0.0
    %1321 = vmatpush1.msra.mxu0 %v1209
    %1322 = vmatprep.subr.mxu0 0.0
    %1323 = vmatpush1.msra.mxu0 %v1210
    %1324 = vmatprep.subr.mxu0 0.0
    %1325 = vmatpush1.msra.mxu0 %v1211
    %1326 = vmatprep.subr.mxu0 0.0
    %1327 = vmatpush1.msra.mxu0 0.0
    %1328 = vmatprep.subr.mxu0 0.0
    %1329 = vmatpush1.msra.mxu0 0.0
    %1330 = vmatprep.subr.mxu0 0.0
    %1331 = vmatpush1.msra.mxu0 0.0
    %1332 = vmatprep.subr.mxu0 0.0
    %1333 = vmatpush1.msra.mxu0 0.0
    %1334 = vmatprep.subr.mxu0 0.0
    %1335 = vmatpush1.msra.mxu0 0.0
    %1336 = vmatprep.subr.mxu0 0.0
    %1337 = vmatpush1.msra.mxu0 0.0
    %1338 = vmatprep.subr.mxu0 0.0
    %1339 = vmatpush1.msra.mxu0 0.0
    %1340 = vmatprep.subr.mxu0 0.0
    %1341 = vmatpush1.msra.mxu0 0.0
    %1342 = vmatprep.subr.mxu0 0.0
    %1343 = vmatpush1.msra.mxu0 0.0
    %1344 = vmatprep.subr.mxu0 0.0
    %1345 = vmatpush1.msra.mxu0 0.0
    %1346 = vmatprep.subr.mxu0 0.0
    %1347 = vmatpush1.msra.mxu0 0.0
    %1348 = vmatprep.subr.mxu0 0.0
    %1349 = vmatpush1.msra.mxu0 0.0
    %1350 = vmatprep.subr.mxu0 0.0
    %1351 = vmatpush1.msra.mxu0 0.0
    %1352 = vmatprep.subr.mxu0 0.0
    %1353 = vmatpush1.msra.mxu0 0.0
    %1354 = vmatprep.subr.mxu0 0.0
    %1355 = vmatpush1.msra.mxu0 0.0
    %1356 = vmatprep.subr.mxu0 0.0
    %1357 = vmatpush1.msra.mxu0 0.0
    %1358 = vmatprep.subr.mxu0 0.0
    %1359 = vmatpush1.msra.mxu0 0.0
    %1360 = vmatprep.subr.mxu0 0.0
    %1361 = vmatpush1.msra.mxu0 0.0
    %1362 = vmatprep.subr.mxu0 0.0
    %1363 = vmatpush1.msra.mxu0 0.0
    %1364 = vmatprep.subr.mxu0 0.0
    %1365 = vmatpush1.msra.mxu0 0.0
    %1366 = vmatprep.subr.mxu0 0.0
    %1367 = vmatpush1.msra.mxu0 0.0
    %1368 = vmatprep.subr.mxu0 0.0
    %1369 = vmatpush1.msra.mxu0 0.0
    %1370 = vmatprep.subr.mxu0 0.0
    %1371 = vmatpush1.msra.mxu0 0.0
    %1372 = vmatprep.subr.mxu0 0.0
    %1373 = vmatpush1.msra.mxu0 0.0
    %1374 = vmatprep.subr.mxu0 0.0
    %1375 = vmatpush1.msra.mxu0 0.0
    %1376 = vmatprep.subr.mxu0 0.0
    %1377 = vmatpush1.msra.mxu0 0.0
    %1378 = vmatprep.subr.mxu0 0.0
    %1379 = vmatpush1.msra.mxu0 0.0
    %1380 = vmatprep.subr.mxu0 0.0
    %1381 = vmatpush1.msra.mxu0 0.0
    %1382 = vmatprep.mubr.f32.mxu0 0.0
    %1383 = vmatmul.mubr.f32.gmra.mrb[0].mxu0 %v1313
    %v1384 = vpop.f32.mrb[0].mxu0
    %v1385 = vadd.f32 %v1304, %v1384
    %v1386 = vpop.f32.mrb[0].mxu0
    %1387 = vmatprep.mubr.f32.mxu0 0.0
    %1388 = vmatmul.mubr.f32.gmra.mrb[0].mxu0 %v1316
    %v1389 = vpop.f32.mrb[0].mxu0
    %v1390 = vadd.f32 %v1309, %v1389
    %v1391 = vpop.f32.mrb[0].mxu0
    %1392 = vdwg.mxu0
    %s1393 = scalar_lea.vmem [#allocation4], 2
    %v1394 = vld [vmem:[%s1393] ss:$2 sm:$0xff]
    %s1395 = scalar_lea.vmem [#allocation4], 18
    %v1396 = vld [vmem:[%s1395] ss:$2 sm:$0x3]
    %v1398 = vsel %vm564, %v1394, 0
    %v1401 = vsel %vm564, %v1396, 0
    %1403 = vmatprep.subr.mxu0 0.0
    %1404 = vmatpush1.msra.mxu0 %v1216
    %1405 = vmatprep.subr.mxu0 0.0
    %1406 = vmatpush1.msra.mxu0 %v1217
    %1407 = vmatprep.subr.mxu0 0.0
    %1408 = vmatpush1.msra.mxu0 %v1218
    %1409 = vmatprep.subr.mxu0 0.0
    %1410 = vmatpush1.msra.mxu0 %v1219
    %1411 = vmatprep.subr.mxu0 0.0
    %1412 = vmatpush1.msra.mxu0 0.0
    %1413 = vmatprep.subr.mxu0 0.0
    %1414 = vmatpush1.msra.mxu0 0.0
    %1415 = vmatprep.subr.mxu0 0.0
    %1416 = vmatpush1.msra.mxu0 0.0
    %1417 = vmatprep.subr.mxu0 0.0
    %1418 = vmatpush1.msra.mxu0 0.0
    %1419 = vmatprep.subr.mxu0 0.0
    %1420 = vmatpush1.msra.mxu0 0.0
    %1421 = vmatprep.subr.mxu0 0.0
    %1422 = vmatpush1.msra.mxu0 0.0
    %1423 = vmatprep.subr.mxu0 0.0
    %1424 = vmatpush1.msra.mxu0 0.0
    %1425 = vmatprep.subr.mxu0 0.0
    %1426 = vmatpush1.msra.mxu0 0.0
    %1427 = vmatprep.subr.mxu0 0.0
    %1428 = vmatpush1.msra.mxu0 0.0
    %1429 = vmatprep.subr.mxu0 0.0
    %1430 = vmatpush1.msra.mxu0 0.0
    %1431 = vmatprep.subr.mxu0 0.0
    %1432 = vmatpush1.msra.mxu0 0.0
    %1433 = vmatprep.subr.mxu0 0.0
    %1434 = vmatpush1.msra.mxu0 0.0
    %1435 = vmatprep.subr.mxu0 0.0
    %1436 = vmatpush1.msra.mxu0 0.0
    %1437 = vmatprep.subr.mxu0 0.0
    %1438 = vmatpush1.msra.mxu0 0.0
    %1439 = vmatprep.subr.mxu0 0.0
    %1440 = vmatpush1.msra.mxu0 0.0
    %1441 = vmatprep.subr.mxu0 0.0
    %1442 = vmatpush1.msra.mxu0 0.0
    %1443 = vmatprep.subr.mxu0 0.0
    %1444 = vmatpush1.msra.mxu0 0.0
    %1445 = vmatprep.subr.mxu0 0.0
    %1446 = vmatpush1.msra.mxu0 0.0
    %1447 = vmatprep.subr.mxu0 0.0
    %1448 = vmatpush1.msra.mxu0 0.0
    %1449 = vmatprep.subr.mxu0 0.0
    %1450 = vmatpush1.msra.mxu0 0.0
    %1451 = vmatprep.subr.mxu0 0.0
    %1452 = vmatpush1.msra.mxu0 0.0
    %1453 = vmatprep.subr.mxu0 0.0
    %1454 = vmatpush1.msra.mxu0 0.0
    %1455 = vmatprep.subr.mxu0 0.0
    %1456 = vmatpush1.msra.mxu0 0.0
    %1457 = vmatprep.subr.mxu0 0.0
    %1458 = vmatpush1.msra.mxu0 0.0
    %1459 = vmatprep.subr.mxu0 0.0
    %1460 = vmatpush1.msra.mxu0 0.0
    %1461 = vmatprep.subr.mxu0 0.0
    %1462 = vmatpush1.msra.mxu0 0.0
    %1463 = vmatprep.subr.mxu0 0.0
    %1464 = vmatpush1.msra.mxu0 0.0
    %1465 = vmatprep.subr.mxu0 0.0
    %1466 = vmatpush1.msra.mxu0 0.0
    %1467 = vmatprep.mubr.f32.mxu0 0.0
    %1468 = vmatmul.mubr.f32.gmra.mrb[0].mxu0 %v1398
    %v1469 = vpop.f32.mrb[0].mxu0
    %v1470 = vadd.f32 0.0, %v1469
    %v1471 = vpop.f32.mrb[0].mxu0
    %1472 = vmatprep.mubr.f32.mxu0 0.0
    %1473 = vmatmul.mubr.f32.gmra.mrb[0].mxu0 %v1401
    %v1474 = vpop.f32.mrb[0].mxu0
    %v1475 = vadd.f32 0.0, %v1474
    %v1476 = vpop.f32.mrb[0].mxu0
    %1477 = vdwg.mxu0
    %v1478 = vadd.f32 %v1385, %v1470
    %v1479 = vadd.f32 %v1390, %v1475
    %s1480 = scalar_lea.vmem [#allocation4], 3
    %v1481 = vld [vmem:[%s1480] ss:$2 sm:$0xff]
    %s1482 = scalar_lea.vmem [#allocation4], 19
    %v1483 = vld [vmem:[%s1482] ss:$2 sm:$0x3]
    %v1485 = vsel %vm564, %v1481, 0
    %v1488 = vsel %vm564, %v1483, 0
    %1490 = vmatprep.subr.mxu0 0.0
    %1491 = vmatpush1.msra.mxu0 %v1220
    %1492 = vmatprep.subr.mxu0 0.0
    %1493 = vmatpush1.msra.mxu0 %v1221
    %1494 = vmatprep.subr.mxu0 0.0
    %1495 = vmatpush1.msra.mxu0 %v1222
    %1496 = vmatprep.subr.mxu0 0.0
    %1497 = vmatpush1.msra.mxu0 %v1223
    %1498 = vmatprep.subr.mxu0 0.0
    %1499 = vmatpush1.msra.mxu0 0.0
    %1500 = vmatprep.subr.mxu0 0.0
    %1501 = vmatpush1.msra.mxu0 0.0
    %1502 = vmatprep.subr.mxu0 0.0
    %1503 = vmatpush1.msra.mxu0 0.0
    %1504 = vmatprep.subr.mxu0 0.0
    %1505 = vmatpush1.msra.mxu0 0.0
    %1506 = vmatprep.subr.mxu0 0.0
    %1507 = vmatpush1.msra.mxu0 0.0
    %1508 = vmatprep.subr.mxu0 0.0
    %1509 = vmatpush1.msra.mxu0 0.0
    %1510 = vmatprep.subr.mxu0 0.0
    %1511 = vmatpush1.msra.mxu0 0.0
    %1512 = vmatprep.subr.mxu0 0.0
    %1513 = vmatpush1.msra.mxu0 0.0
    %1514 = vmatprep.subr.mxu0 0.0
    %1515 = vmatpush1.msra.mxu0 0.0
    %1516 = vmatprep.subr.mxu0 0.0
    %1517 = vmatpush1.msra.mxu0 0.0
    %1518 = vmatprep.subr.mxu0 0.0
    %1519 = vmatpush1.msra.mxu0 0.0
    %1520 = vmatprep.subr.mxu0 0.0
    %1521 = vmatpush1.msra.mxu0 0.0
    %1522 = vmatprep.subr.mxu0 0.0
    %1523 = vmatpush1.msra.mxu0 0.0
    %1524 = vmatprep.subr.mxu0 0.0
    %1525 = vmatpush1.msra.mxu0 0.0
    %1526 = vmatprep.subr.mxu0 0.0
    %1527 = vmatpush1.msra.mxu0 0.0
    %1528 = vmatprep.subr.mxu0 0.0
    %1529 = vmatpush1.msra.mxu0 0.0
    %1530 = vmatprep.subr.mxu0 0.0
    %1531 = vmatpush1.msra.mxu0 0.0
    %1532 = vmatprep.subr.mxu0 0.0
    %1533 = vmatpush1.msra.mxu0 0.0
    %1534 = vmatprep.subr.mxu0 0.0
    %1535 = vmatpush1.msra.mxu0 0.0
    %1536 = vmatprep.subr.mxu0 0.0
    %1537 = vmatpush1.msra.mxu0 0.0
    %1538 = vmatprep.subr.mxu0 0.0
    %1539 = vmatpush1.msra.mxu0 0.0
    %1540 = vmatprep.subr.mxu0 0.0
    %1541 = vmatpush1.msra.mxu0 0.0
    %1542 = vmatprep.subr.mxu0 0.0
    %1543 = vmatpush1.msra.mxu0 0.0
    %1544 = vmatprep.subr.mxu0 0.0
    %1545 = vmatpush1.msra.mxu0 0.0
    %1546 = vmatprep.subr.mxu0 0.0
    %1547 = vmatpush1.msra.mxu0 0.0
    %1548 = vmatprep.subr.mxu0 0.0
    %1549 = vmatpush1.msra.mxu0 0.0
    %1550 = vmatprep.subr.mxu0 0.0
    %1551 = vmatpush1.msra.mxu0 0.0
    %1552 = vmatprep.subr.mxu0 0.0
    %1553 = vmatpush1.msra.mxu0 0.0
    %1554 = vmatprep.mubr.f32.mxu0 0.0
    %1555 = vmatmul.mubr.f32.gmra.mrb[0].mxu0 %v1485
    %v1556 = vpop.f32.mrb[0].mxu0
    %v1557 = vadd.f32 0.0, %v1556
    %v1558 = vpop.f32.mrb[0].mxu0
    %1559 = vmatprep.mubr.f32.mxu0 0.0
    %1560 = vmatmul.mubr.f32.gmra.mrb[0].mxu0 %v1488
    %v1561 = vpop.f32.mrb[0].mxu0
    %v1562 = vadd.f32 0.0, %v1561
    %v1563 = vpop.f32.mrb[0].mxu0
    %1564 = vdwg.mxu0
    %v1565 = vadd.f32 %v1478, %v1557
    %v1566 = vadd.f32 %v1479, %v1562
    %v1567 = vlaneseq
    %v1568 = vshrl.u32 %v1567, 7
    %v1569 = vsub.s32 6, %v1568
    %v1570 = vrot.slane %v18, %v1569
    %v1571 = vadd.f32 %v1565, %v1570
    %v1572 = vadd.f32 %v1566, %v1570
    %1574 = vset.pattern.permute.xlu0 0
    %1575 = vperm.xlu0 %1574, %v27
    %v1576 = vpop.permute.xlu0 %1575
    %vm1577 = vcmask 1043456
    %v1578 = vrot.slane %v1102, 4
    %v1579 = vrot.slane %v1576, 4
    %v1580 = vsel %vm1577, %v1578, %v1579
    %v1583 = vmul.f32 %v1571, %v1580
    %v1584 = vmul.f32 %v1572, %v1579
    %v1585 = vsel %vm564, %v1583, 0.0
    %v1586 = vsel %vm572, %v1584, 0.0
    %v1587 = vadd.f32 %v1585, %v1586
    %v1588 = vrot.slane %v1587, 4
    %v1589 = vadd.f32 %v1587, %v1588
    %v1590 = vrot.slane %v1589, 2
    %v1591 = vadd.f32 %v1589, %v1590
    %v1592 = vrot.slane %v1591, 1
    %v1593 = vadd.f32 %v1591, %v1592
    %v1594 = vmul.f32 %v1593, 0.125
    %v1595 = vmul.f32 %v1583, %v1583
    %v1596 = vmul.f32 %v1584, %v1584
    %v1597 = vsel %vm564, %v1595, 0.0
    %v1598 = vsel %vm572, %v1596, 0.0
    %v1599 = vadd.f32 %v1597, %v1598
    %v1600 = vrot.slane %v1599, 4
    %v1601 = vadd.f32 %v1599, %v1600
    %v1602 = vrot.slane %v1601, 2
    %v1603 = vadd.f32 %v1601, %v1602
    %v1604 = vrot.slane %v1603, 1
    %v1605 = vadd.f32 %v1603, %v1604
    %v1606 = vmul.f32 %v1605, 0.125
    %v1607 = vmul.f32 %v1594, %v1594
    %v1608 = vsub.f32 %v1606, %v1607
    %v1609 = vadd.f32 %v1608, 1e-05
    %v1610 = vrsqrt.pop %v1609
    %v1611 = vmul.f32 %v18, %v1610
    %v1612 = vmul.f32 %v1594, %v1611
    %v1614 = vrot.slane %v1612, 7
    %v1616 = vsub.f32 %v19, %v1614
    %v1617 = vlaneseq
    %v1618 = vshrl.u32 %v1617, 7
    %v1619 = vsub.s32 7, %v1618
    %v1620 = vrot.slane %v1611, %v1619
    %v1621 = vmul.f32 %v1571, %v1620
    %v1622 = vmul.f32 %v1572, %v1620
    %v1623 = vlaneseq
    %v1624 = vshrl.u32 %v1623, 7
    %v1625 = vsub.s32 0, %v1624
    %v1626 = vrot.slane %v1616, %v1625
    %v1627 = vadd.f32 %v1621, %v1626
    %v1628 = vadd.f32 %v1622, %v1626
    %v1629 = vsub.f32 0.0, %v1627
    %v1630 = vsub.f32 0.0, %v1628
    %v1631 = vmul.f32 %v1629, 1.442695
    %v1632 = vpow.pop %v1631
    %v1633 = vmul.f32 %v1630, 1.442695
    %v1634 = vpow.pop %v1633
    %v1635 = vadd.f32 %v1632, 1.0
    %v1636 = vadd.f32 %v1634, 1.0
    %v1637 = vrcp.pop %v1635
    %v1638 = vrcp.pop %v1636
    %1641 = vrot.lane.b32.xlu0 %v1637, 112
    %v1642 = vpop.permute.xlu0 %1641
    %1643 = vrot.lane.b32.xlu0 %v1638, 112
    %v1644 = vpop.permute.xlu0 %1643
    %v1647 = vmul.f32 %v1627, %v1642
    %v1648 = vmul.f32 %v1628, %v1644
    %vm1649 = vcmask 125952
    %1650 = vst.msk [vmem:[#allocation5] sm:$0xf] %vm1649, %v1647
    %vm1651 = vcmask 130053
    %1652 = vst.msk [vmem:[#allocation5 - $0x1] sm:$0xe0] %vm1651, %v1647
    %1653 = vst.msk [vmem:[#allocation5 + $0x7] sm:$0x1] %vm681, %v1648
    %v1654 = vld [vmem:[%s1 + $0xe0] sm:$0xff]
    %v1655 = vld [vmem:[%s1 + $0xe8] sm:$0xff]
    %v1656 = vld [vmem:[%s1 + $0xf0] sm:$0xff]
    %v1657 = vld [vmem:[%s1 + $0xf8] sm:$0xff]
    %v1658 = vld [vmem:[%s1 + $0x100] sm:$0xff]
    %v1659 = vld [vmem:[%s1 + $0x108] sm:$0xff]
    %v1660 = vld [vmem:[%s1 + $0x110] sm:$0xff]
    %v1661 = vld [vmem:[%s1 + $0x118] sm:$0xff]
    %v1662 = vld [vmem:[#allocation5] ss:$4 sm:$0x3]
    %s1663 = scalar_lea.vmem [#allocation5], 1
    %v1664 = vld [vmem:[%s1663] ss:$4 sm:$0x3]
    %v1666 = vsel %vm683, %v1664, 0
    %1668 = vmatprep.subr.mxu0 0.0
    %1669 = vmatpush1.msra.mxu0 %v1656
    %1670 = vmatprep.subr.mxu0 0.0
    %1671 = vmatpush1.msra.mxu0 %v1657
    %1672 = vmatprep.subr.mxu0 0.0
    %1673 = vmatpush1.msra.mxu0 0.0
    %1674 = vmatprep.subr.mxu0 0.0
    %1675 = vmatpush1.msra.mxu0 0.0
    %1676 = vmatprep.subr.mxu0 0.0
    %1677 = vmatpush1.msra.mxu0 0.0
    %1678 = vmatprep.subr.mxu0 0.0
    %1679 = vmatpush1.msra.mxu0 0.0
    %1680 = vmatprep.subr.mxu0 0.0
    %1681 = vmatpush1.msra.mxu0 0.0
    %1682 = vmatprep.subr.mxu0 0.0
    %1683 = vmatpush1.msra.mxu0 0.0
    %1684 = vmatprep.subr.mxu0 0.0
    %1685 = vmatpush1.msra.mxu0 0.0
    %1686 = vmatprep.subr.mxu0 0.0
    %1687 = vmatpush1.msra.mxu0 0.0
    %1688 = vmatprep.subr.mxu0 0.0
    %1689 = vmatpush1.msra.mxu0 0.0
    %1690 = vmatprep.subr.mxu0 0.0
    %1691 = vmatpush1.msra.mxu0 0.0
    %1692 = vmatprep.subr.mxu0 0.0
    %1693 = vmatpush1.msra.mxu0 0.0
    %1694 = vmatprep.subr.mxu0 0.0
    %1695 = vmatpush1.msra.mxu0 0.0
    %1696 = vmatprep.subr.mxu0 0.0
    %1697 = vmatpush1.msra.mxu0 0.0
    %1698 = vmatprep.subr.mxu0 0.0
    %1699 = vmatpush1.msra.mxu0 0.0
    %1700 = vmatprep.subr.mxu0 0.0
    %1701 = vmatpush1.msra.mxu0 0.0
    %1702 = vmatprep.subr.mxu0 0.0
    %1703 = vmatpush1.msra.mxu0 0.0
    %1704 = vmatprep.subr.mxu0 0.0
    %1705 = vmatpush1.msra.mxu0 0.0
    %1706 = vmatprep.subr.mxu0 0.0
    %1707 = vmatpush1.msra.mxu0 0.0
    %1708 = vmatprep.subr.mxu0 0.0
    %1709 = vmatpush1.msra.mxu0 0.0
    %1710 = vmatprep.subr.mxu0 0.0
    %1711 = vmatpush1.msra.mxu0 0.0
    %1712 = vmatprep.subr.mxu0 0.0
    %1713 = vmatpush1.msra.mxu0 0.0
    %1714 = vmatprep.subr.mxu0 0.0
    %1715 = vmatpush1.msra.mxu0 0.0
    %1716 = vmatprep.subr.mxu0 0.0
    %1717 = vmatpush1.msra.mxu0 0.0
    %1718 = vmatprep.subr.mxu0 0.0
    %1719 = vmatpush1.msra.mxu0 0.0
    %1720 = vmatprep.subr.mxu0 0.0
    %1721 = vmatpush1.msra.mxu0 0.0
    %1722 = vmatprep.subr.mxu0 0.0
    %1723 = vmatpush1.msra.mxu0 0.0
    %1724 = vmatprep.subr.mxu0 0.0
    %1725 = vmatpush1.msra.mxu0 0.0
    %1726 = vmatprep.subr.mxu0 0.0
    %1727 = vmatpush1.msra.mxu0 0.0
    %1728 = vmatprep.subr.mxu0 0.0
    %1729 = vmatpush1.msra.mxu0 0.0
    %1730 = vmatprep.subr.mxu0 0.0
    %1731 = vmatpush1.msra.mxu0 0.0
    %1732 = vmatprep.mubr.f32.mxu0 0.0
    %1733 = vmatmul.mubr.f32.gmra.mrb[0].mxu0 %v1666
    %v1734 = vpop.f32.mrb[0].mxu0
    %v1735 = vadd.f32 0.0, %v1734
    %v1736 = vpop.f32.mrb[0].mxu0
    %1737 = vdwg.mxu0
    %v1739 = vsel %vm683, %v1662, 0
    %1741 = vmatprep.subr.mxu0 0.0
    %1742 = vmatpush1.msra.mxu0 %v1654
    %1743 = vmatprep.subr.mxu0 0.0
    %1744 = vmatpush1.msra.mxu0 %v1655
    %1745 = vmatprep.subr.mxu0 0.0
    %1746 = vmatpush1.msra.mxu0 0.0
    %1747 = vmatprep.subr.mxu0 0.0
    %1748 = vmatpush1.msra.mxu0 0.0
    %1749 = vmatprep.subr.mxu0 0.0
    %1750 = vmatpush1.msra.mxu0 0.0
    %1751 = vmatprep.subr.mxu0 0.0
    %1752 = vmatpush1.msra.mxu0 0.0
    %1753 = vmatprep.subr.mxu0 0.0
    %1754 = vmatpush1.msra.mxu0 0.0
    %1755 = vmatprep.subr.mxu0 0.0
    %1756 = vmatpush1.msra.mxu0 0.0
    %1757 = vmatprep.subr.mxu0 0.0
    %1758 = vmatpush1.msra.mxu0 0.0
    %1759 = vmatprep.subr.mxu0 0.0
    %1760 = vmatpush1.msra.mxu0 0.0
    %1761 = vmatprep.subr.mxu0 0.0
    %1762 = vmatpush1.msra.mxu0 0.0
    %1763 = vmatprep.subr.mxu0 0.0
    %1764 = vmatpush1.msra.mxu0 0.0
    %1765 = vmatprep.subr.mxu0 0.0
    %1766 = vmatpush1.msra.mxu0 0.0
    %1767 = vmatprep.subr.mxu0 0.0
    %1768 = vmatpush1.msra.mxu0 0.0
    %1769 = vmatprep.subr.mxu0 0.0
    %1770 = vmatpush1.msra.mxu0 0.0
    %1771 = vmatprep.subr.mxu0 0.0
    %1772 = vmatpush1.msra.mxu0 0.0
    %1773 = vmatprep.subr.mxu0 0.0
    %1774 = vmatpush1.msra.mxu0 0.0
    %1775 = vmatprep.subr.mxu0 0.0
    %1776 = vmatpush1.msra.mxu0 0.0
    %1777 = vmatprep.subr.mxu0 0.0
    %1778 = vmatpush1.msra.mxu0 0.0
    %1779 = vmatprep.subr.mxu0 0.0
    %1780 = vmatpush1.msra.mxu0 0.0
    %1781 = vmatprep.subr.mxu0 0.0
    %1782 = vmatpush1.msra.mxu0 0.0
    %1783 = vmatprep.subr.mxu0 0.0
    %1784 = vmatpush1.msra.mxu0 0.0
    %1785 = vmatprep.subr.mxu0 0.0
    %1786 = vmatpush1.msra.mxu0 0.0
    %1787 = vmatprep.subr.mxu0 0.0
    %1788 = vmatpush1.msra.mxu0 0.0
    %1789 = vmatprep.subr.mxu0 0.0
    %1790 = vmatpush1.msra.mxu0 0.0
    %1791 = vmatprep.subr.mxu0 0.0
    %1792 = vmatpush1.msra.mxu0 0.0
    %1793 = vmatprep.subr.mxu0 0.0
    %1794 = vmatpush1.msra.mxu0 0.0
    %1795 = vmatprep.subr.mxu0 0.0
    %1796 = vmatpush1.msra.mxu0 0.0
    %1797 = vmatprep.subr.mxu0 0.0
    %1798 = vmatpush1.msra.mxu0 0.0
    %1799 = vmatprep.subr.mxu0 0.0
    %1800 = vmatpush1.msra.mxu0 0.0
    %1801 = vmatprep.subr.mxu0 0.0
    %1802 = vmatpush1.msra.mxu0 0.0
    %1803 = vmatprep.subr.mxu0 0.0
    %1804 = vmatpush1.msra.mxu0 0.0
    %1805 = vmatprep.mubr.f32.mxu0 0.0
    %1806 = vmatmul.mubr.f32.gmra.mrb[0].mxu0 %v1739
    %v1807 = vpop.f32.mrb[0].mxu0
    %v1808 = vadd.f32 %v1735, %v1807
    %v1809 = vpop.f32.mrb[0].mxu0
    %1810 = vdwg.mxu0
    %s1811 = scalar_lea.vmem [#allocation5], 2
    %v1812 = vld [vmem:[%s1811] ss:$4 sm:$0x3]
    %v1814 = vsel %vm683, %v1812, 0
    %1816 = vmatprep.subr.mxu0 0.0
    %1817 = vmatpush1.msra.mxu0 %v1658
    %1818 = vmatprep.subr.mxu0 0.0
    %1819 = vmatpush1.msra.mxu0 %v1659
    %1820 = vmatprep.subr.mxu0 0.0
    %1821 = vmatpush1.msra.mxu0 0.0
    %1822 = vmatprep.subr.mxu0 0.0
    %1823 = vmatpush1.msra.mxu0 0.0
    %1824 = vmatprep.subr.mxu0 0.0
    %1825 = vmatpush1.msra.mxu0 0.0
    %1826 = vmatprep.subr.mxu0 0.0
    %1827 = vmatpush1.msra.mxu0 0.0
    %1828 = vmatprep.subr.mxu0 0.0
    %1829 = vmatpush1.msra.mxu0 0.0
    %1830 = vmatprep.subr.mxu0 0.0
    %1831 = vmatpush1.msra.mxu0 0.0
    %1832 = vmatprep.subr.mxu0 0.0
    %1833 = vmatpush1.msra.mxu0 0.0
    %1834 = vmatprep.subr.mxu0 0.0
    %1835 = vmatpush1.msra.mxu0 0.0
    %1836 = vmatprep.subr.mxu0 0.0
    %1837 = vmatpush1.msra.mxu0 0.0
    %1838 = vmatprep.subr.mxu0 0.0
    %1839 = vmatpush1.msra.mxu0 0.0
    %1840 = vmatprep.subr.mxu0 0.0
    %1841 = vmatpush1.msra.mxu0 0.0
    %1842 = vmatprep.subr.mxu0 0.0
    %1843 = vmatpush1.msra.mxu0 0.0
    %1844 = vmatprep.subr.mxu0 0.0
    %1845 = vmatpush1.msra.mxu0 0.0
    %1846 = vmatprep.subr.mxu0 0.0
    %1847 = vmatpush1.msra.mxu0 0.0
    %1848 = vmatprep.subr.mxu0 0.0
    %1849 = vmatpush1.msra.mxu0 0.0
    %1850 = vmatprep.subr.mxu0 0.0
    %1851 = vmatpush1.msra.mxu0 0.0
    %1852 = vmatprep.subr.mxu0 0.0
    %1853 = vmatpush1.msra.mxu0 0.0
    %1854 = vmatprep.subr.mxu0 0.0
    %1855 = vmatpush1.msra.mxu0 0.0
    %1856 = vmatprep.subr.mxu0 0.0
    %1857 = vmatpush1.msra.mxu0 0.0
    %1858 = vmatprep.subr.mxu0 0.0
    %1859 = vmatpush1.msra.mxu0 0.0
    %1860 = vmatprep.subr.mxu0 0.0
    %1861 = vmatpush1.msra.mxu0 0.0
    %1862 = vmatprep.subr.mxu0 0.0
    %1863 = vmatpush1.msra.mxu0 0.0
    %1864 = vmatprep.subr.mxu0 0.0
    %1865 = vmatpush1.msra.mxu0 0.0
    %1866 = vmatprep.subr.mxu0 0.0
    %1867 = vmatpush1.msra.mxu0 0.0
    %1868 = vmatprep.subr.mxu0 0.0
    %1869 = vmatpush1.msra.mxu0 0.0
    %1870 = vmatprep.subr.mxu0 0.0
    %1871 = vmatpush1.msra.mxu0 0.0
    %1872 = vmatprep.subr.mxu0 0.0
    %1873 = vmatpush1.msra.mxu0 0.0
    %1874 = vmatprep.subr.mxu0 0.0
    %1875 = vmatpush1.msra.mxu0 0.0
    %1876 = vmatprep.subr.mxu0 0.0
    %1877 = vmatpush1.msra.mxu0 0.0
    %1878 = vmatprep.subr.mxu0 0.0
    %1879 = vmatpush1.msra.mxu0 0.0
    %1880 = vmatprep.mubr.f32.mxu0 0.0
    %1881 = vmatmul.mubr.f32.gmra.mrb[0].mxu0 %v1814
    %v1882 = vpop.f32.mrb[0].mxu0
    %v1883 = vadd.f32 0.0, %v1882
    %v1884 = vpop.f32.mrb[0].mxu0
    %1885 = vdwg.mxu0
    %v1886 = vadd.f32 %v1808, %v1883
    %s1887 = scalar_lea.vmem [#allocation5], 3
    %v1888 = vld [vmem:[%s1887] ss:$4 sm:$0x3]
    %v1890 = vsel %vm683, %v1888, 0
    %1892 = vmatprep.subr.mxu0 0.0
    %1893 = vmatpush1.msra.mxu0 %v1660
    %1894 = vmatprep.subr.mxu0 0.0
    %1895 = vmatpush1.msra.mxu0 %v1661
    %1896 = vmatprep.subr.mxu0 0.0
    %1897 = vmatpush1.msra.mxu0 0.0
    %1898 = vmatprep.subr.mxu0 0.0
    %1899 = vmatpush1.msra.mxu0 0.0
    %1900 = vmatprep.subr.mxu0 0.0
    %1901 = vmatpush1.msra.mxu0 0.0
    %1902 = vmatprep.subr.mxu0 0.0
    %1903 = vmatpush1.msra.mxu0 0.0
    %1904 = vmatprep.subr.mxu0 0.0
    %1905 = vmatpush1.msra.mxu0 0.0
    %1906 = vmatprep.subr.mxu0 0.0
    %1907 = vmatpush1.msra.mxu0 0.0
    %1908 = vmatprep.subr.mxu0 0.0
    %1909 = vmatpush1.msra.mxu0 0.0
    %1910 = vmatprep.subr.mxu0 0.0
    %1911 = vmatpush1.msra.mxu0 0.0
    %1912 = vmatprep.subr.mxu0 0.0
    %1913 = vmatpush1.msra.mxu0 0.0
    %1914 = vmatprep.subr.mxu0 0.0
    %1915 = vmatpush1.msra.mxu0 0.0
    %1916 = vmatprep.subr.mxu0 0.0
    %1917 = vmatpush1.msra.mxu0 0.0
    %1918 = vmatprep.subr.mxu0 0.0
    %1919 = vmatpush1.msra.mxu0 0.0
    %1920 = vmatprep.subr.mxu0 0.0
    %1921 = vmatpush1.msra.mxu0 0.0
    %1922 = vmatprep.subr.mxu0 0.0
    %1923 = vmatpush1.msra.mxu0 0.0
    %1924 = vmatprep.subr.mxu0 0.0
    %1925 = vmatpush1.msra.mxu0 0.0
    %1926 = vmatprep.subr.mxu0 0.0
    %1927 = vmatpush1.msra.mxu0 0.0
    %1928 = vmatprep.subr.mxu0 0.0
    %1929 = vmatpush1.msra.mxu0 0.0
    %1930 = vmatprep.subr.mxu0 0.0
    %1931 = vmatpush1.msra.mxu0 0.0
    %1932 = vmatprep.subr.mxu0 0.0
    %1933 = vmatpush1.msra.mxu0 0.0
    %1934 = vmatprep.subr.mxu0 0.0
    %1935 = vmatpush1.msra.mxu0 0.0
    %1936 = vmatprep.subr.mxu0 0.0
    %1937 = vmatpush1.msra.mxu0 0.0
    %1938 = vmatprep.subr.mxu0 0.0
    %1939 = vmatpush1.msra.mxu0 0.0
    %1940 = vmatprep.subr.mxu0 0.0
    %1941 = vmatpush1.msra.mxu0 0.0
    %1942 = vmatprep.subr.mxu0 0.0
    %1943 = vmatpush1.msra.mxu0 0.0
    %1944 = vmatprep.subr.mxu0 0.0
    %1945 = vmatpush1.msra.mxu0 0.0
    %1946 = vmatprep.subr.mxu0 0.0
    %1947 = vmatpush1.msra.mxu0 0.0
    %1948 = vmatprep.subr.mxu0 0.0
    %1949 = vmatpush1.msra.mxu0 0.0
    %1950 = vmatprep.subr.mxu0 0.0
    %1951 = vmatpush1.msra.mxu0 0.0
    %1952 = vmatprep.subr.mxu0 0.0
    %1953 = vmatpush1.msra.mxu0 0.0
    %1954 = vmatprep.subr.mxu0 0.0
    %1955 = vmatpush1.msra.mxu0 0.0
    %1956 = vmatprep.mubr.f32.mxu0 0.0
    %1957 = vmatmul.mubr.f32.gmra.mrb[0].mxu0 %v1890
    %v1958 = vpop.f32.mrb[0].mxu0
    %v1959 = vadd.f32 0.0, %v1958
    %v1960 = vpop.f32.mrb[0].mxu0
    %1961 = vdwg.mxu0
    %v1962 = vadd.f32 %v1886, %v1959
    %v1963 = vlaneseq
    %v1964 = vshrl.u32 %v1963, 7
    %v1965 = vsub.s32 1, %v1964
    %v1966 = vrot.slane %v19, %v1965
    %v1967 = vadd.f32 %v1962, %v1966
    %vm1968 = vcmask 25600
    %v1969 = vsel %vm1968, %v1967, -inf
    %1970 = vmax.xlane.f32.xlu0 %v1969
    %v1971 = vpop.xlane.xlu0 %1970
    %v1972 = vsub.f32 %v1967, %v1971
    %v1973 = vmul.f32 %v1972, 1.442695
    %v1974 = vpow.pop %v1973
    %v1975 = vsel %vm1968, %v1974, 0.0
    %1976 = vadd.xlane.f32.xlu0 %v1975
    %v1977 = vpop.xlane.xlu0 %1976
    %v1978 = vlog2.pop %v1977
    %v1979 = vmul.f32 %v1978, 0.6931472
    %v1980 = vsub.f32 %v1972, %v1979
    %1981 = vst.msk [vmem:[#allocation6] sm:$0x3] %vm1968, %v1980
    // Predicated region
    $region18: #{latent_classifier_forward.1} parent=1 // pred_check
      _
    $region19: #{latent_classifier_forward.1} parent=1 // pred_check_branch
      %1983 = sbr.rel (0) target = $region21
    $region20: #{latent_classifier_forward.1} parent=1 // pred_region
      %s1985 = ssub.s32 32, 32
      %1986 = vsyncadd [#allocation7], %s1985
      %s1988 = sshll.u32 [#allocation6], 4
      %s1989 = int_to_ptr.vmem [resolvable:$true] %s1988
      %1991 = dma.vmem_to_hbm [thread:$0]  %s1989, 32, %s4, [#allocation7]
    $region21: #{latent_classifier_forward.1} parent=1 // pred_fallthru
      _
    // Predicated region
    $region22: #{latent_classifier_forward.1} parent=1 // pred_check
      _
    $region23: #{latent_classifier_forward.1} parent=1 // pred_check_branch
      %1993 = sbr.rel (0) target = $region25
    $region24: #{latent_classifier_forward.1} parent=1 // pred_region
      %1994 = dma.done [#allocation7], 32
    $region25: #{latent_classifier_forward.1} parent=1 // pred_fallthru
      _
    %1995 = vsyncpa [#allocation7], 1

</llo_original>
